<compile_context>
chip_gen: v6e
topology: v6e:2x2x1
jax: 0.10.0
libtpu: 0.0.40
codegen_flags: <defaults>
</compile_context>

<pallas_src>
import functools
import math

import jax
import jax.numpy as jnp
from jax.experimental import pallas as pl
from jax.experimental.pallas import tpu as pltpu


# ---------------------------------------------------------------------------
# Shared math helpers (used by both the kernel and the pure-JAX reference)
# ---------------------------------------------------------------------------
def _layer_norm(v, g, b, eps=1e-6):
    # BERT-pytorch LayerNorm: (x - mean) / (std_unbiased + eps) * g + b
    # NOTE: unbiased variance (/(H-1)) and eps added to std — do not "optimize"
    # to rsqrt(var + eps); that changes numerics vs. the reference module.
    h = v.shape[-1]
    mean = jnp.mean(v, axis=-1, keepdims=True)
    d = v - mean
    var = jnp.sum(d * d, axis=-1, keepdims=True) * (1.0 / (h - 1))
    inv = 1.0 / (jnp.sqrt(var) + eps)
    return g * (d * inv) + b


def _gelu_tanh(x):
    # BERT-pytorch GELU (tanh approximation); tanh lowers to the EUP.
    return 0.5 * x * (1.0 + jnp.tanh(
        math.sqrt(2.0 / math.pi) * (x + 0.044715 * x * x * x)))


# ---------------------------------------------------------------------------
# Fused Pallas kernel: embedding + all transformer layers
#   grid = (batch_blocks, n_layers); activation resident in the output block.
# ---------------------------------------------------------------------------
def sbert_fused_kernel(x_ref, pe_ref, mask_ref, we_ref, be_ref,
                       wqkv, bqkv, wo, bo, ln1g, ln1b,
                       w1, b1, w2, b2, ln2g, ln2b,
                       o_ref, ctx_scr, *, n_heads, seq_len):
    layer = pl.program_id(1)

    # ---- layer-0 prologue: BERTEmbedding written into the resident block ----
    @pl.when(layer == 0)
    def _embed():
        obs = jnp.dot(x_ref[...].astype(jnp.bfloat16), we_ref[...],
                      preferred_element_type=jnp.float32) + be_ref[...]
        hd2 = obs.shape[-1]
        o_ref[:, :hd2] = obs            # first half: observation embedding
        o_ref[:, hd2:] = pe_ref[...]    # second half: positional encoding
        # TODO(synk): embedding dropout is identity (inference/eval).

    h = o_ref[...]                      # [rows, H] f32, resident across layers
    rows, hidden = h.shape
    tb = rows // seq_len                # sequences in this batch block
    dh = hidden // n_heads
    scale = 1.0 / math.sqrt(dh)

    # ---- sublayer 1: h + MHA(LN(h)) (pre-norm residual) ---------------------
    xn = _layer_norm(h, ln1g[0], ln1b[0]).astype(jnp.bfloat16)
    qkv = jnp.dot(xn, wqkv[0], preferred_element_type=jnp.float32) + bqkv[0]
    valid = mask_ref[...] > 0           # [tb, 1, T] key mask per sequence

    for hsel in range(n_heads):         # static per-head lane slices of [rows, 3H]
        q = qkv[:, hsel * dh:(hsel + 1) * dh]
        k = qkv[:, hidden + hsel * dh:hidden + (hsel + 1) * dh]
        v = qkv[:, 2 * hidden + hsel * dh:2 * hidden + (hsel + 1) * dh]
        # fold scale into q before the bf16 cast; bf16 operands, f32 accumulate
        qb = (q * scale).astype(jnp.bfloat16).reshape(tb, seq_len, dh)
        kb = k.astype(jnp.bfloat16).reshape(tb, seq_len, dh)
        vb = v.astype(jnp.bfloat16).reshape(tb, seq_len, dh)
        s = jnp.einsum("bqd,bkd->bqk", qb, kb,
                       preferred_element_type=jnp.float32)      # [tb, T, T]
        s = jnp.where(valid, s, -1e9)   # masked_fill(mask == 0, -1e9)
        m = jnp.max(s, axis=-1, keepdims=True)
        e = jnp.exp(s - m)
        p = (e * pl.reciprocal(jnp.sum(e, axis=-1, keepdims=True),
                               approx=True)).astype(jnp.bfloat16)
        ctx = jnp.einsum("bqk,bkd->bqd", p, vb,
                         preferred_element_type=jnp.float32)    # [tb, T, dh]
        ctx_scr[:, hsel * dh:(hsel + 1) * dh] = (
            ctx.reshape(rows, dh).astype(jnp.bfloat16))

    attn = jnp.dot(ctx_scr[...], wo[0],
                   preferred_element_type=jnp.float32) + bo[0]  # K = H matmul
    h = h + attn
    # TODO(synk): attention / sublayer dropouts are identity (inference/eval).

    # ---- sublayer 2: h + FFN(LN(h)) ------------------------------------------
    xn2 = _layer_norm(h, ln2g[0], ln2b[0]).astype(jnp.bfloat16)
    hh = _gelu_tanh(jnp.dot(xn2, w1[0],
                            preferred_element_type=jnp.float32) + b1[0])
    ff = jnp.dot(hh.astype(jnp.bfloat16), w2[0],
                 preferred_element_type=jnp.float32) + b2[0]
    o_ref[...] = h + ff                 # write-back: output block stays resident


# ---------------------------------------------------------------------------
# BlockSpec helpers
# ---------------------------------------------------------------------------
def _const_spec(a):
    nd = a.ndim
    return pl.BlockSpec(a.shape, lambda bi, l, _n=nd: (0,) * _n)


def _batch_spec(a, block0):
    nd = a.ndim
    return pl.BlockSpec((block0,) + a.shape[1:],
                        lambda bi, l, _n=nd: (bi,) + (0,) * (_n - 1))


def _layer_spec(a):
    nd = a.ndim
    return pl.BlockSpec((1,) + a.shape[1:],
                        lambda bi, l, _n=nd: (l,) + (0,) * (_n - 1))


# ---------------------------------------------------------------------------
# Wrapper: one pallas_call for the whole forward pass
# ---------------------------------------------------------------------------
def sbert_forward(x, doy, mask, params, n_heads, batch_block=1):
    b, t, f = x.shape
    hd2 = params["we"].shape[1]
    hidden = 2 * hd2
    layers = params["layers"]
    n_layers = len(layers)
    assert b % batch_block == 0 and hidden % n_heads == 0
    rows = batch_block * t              # activation rows per grid step
    bt = b * t

    # --- plain-JAX glue: flatten activations, gather PE, key mask [B,1,T] ---
    x_flat = x.reshape(bt, f)
    pe_flat = params["pe_table"][doy].reshape(bt, hd2)
    key_mask = (mask > 0).astype(jnp.int32)[:, None, :]     # [B, 1, T]

    # --- stack per-layer weights; fuse Wq|Wk|Wv into one [H, 3H] matrix -----
    def stack(name):
        return jnp.stack([lyr[name] for lyr in layers], axis=0)

    wqkv = jnp.stack([jnp.concatenate([l["wq"], l["wk"], l["wv"]], axis=1)
                      for l in layers], axis=0)              # [L, H, 3H] bf16
    bqkv = jnp.stack([jnp.concatenate([l["bq"], l["bk"], l["bv"]], axis=1)
                      for l in layers], axis=0)              # [L, 1, 3H] f32

    layer_inputs = [
        wqkv, bqkv, stack("wo"), stack("bo"),
        stack("ln1g"), stack("ln1b"),
        stack("w1"), stack("b1"), stack("w2"), stack("b2"),
        stack("ln2g"), stack("ln2b"),
    ]
    const_inputs = [x_flat, pe_flat, key_mask, params["we"], params["be"]]

    in_specs = ([_batch_spec(x_flat, rows), _batch_spec(pe_flat, rows),
                 _batch_spec(key_mask, batch_block),
                 _const_spec(params["we"]), _const_spec(params["be"])]
                + [_layer_spec(a) for a in layer_inputs])
    # TODO(synk): constant inputs could be single-buffered (pl.Buffered(1));
    # kept at the default depth here — they are tiny after dropping the bias.

    # --- explicit VMEM budget: 2x layer weights + activation + intermediates --
    per_layer_w = sum(int(a.size) // n_layers * a.dtype.itemsize
                      for a in layer_inputs)
    const_bytes = sum(int(a.size) * a.dtype.itemsize for a in const_inputs)
    inter_bytes = (rows * 3 * hidden * 4            # fused QKV (f32)
                   + 3 * batch_block * t * t * 4    # scores/probs per head
                   + rows * hidden * 2              # ctx scratch (bf16)
                   + rows * 4 * hidden * 4)         # FFN hidden (f32)
    est = 2 * per_layer_w + 2 * const_bytes + 2 * rows * hidden * 4 + inter_bytes
    vmem_limit = int(min(100 * 2**20, max(32 * 2**20, 2 * est)))

    out = pl.pallas_call(
        functools.partial(sbert_fused_kernel, n_heads=n_heads, seq_len=t),
        out_shape=jax.ShapeDtypeStruct((bt, hidden), jnp.float32),
        grid=(b // batch_block, n_layers),
        in_specs=in_specs,
        out_specs=pl.BlockSpec((rows, hidden), lambda bi, l: (bi, 0)),
        scratch_shapes=[pltpu.VMEM((rows, hidden), jnp.bfloat16)],
        compiler_params=pltpu.CompilerParams(
            dimension_semantics=("parallel", "arbitrary"),
            vmem_limit_bytes=vmem_limit),
    )(*const_inputs, *layer_inputs)

    return out.reshape(b, t, hidden)


# ---------------------------------------------------------------------------
# Pure-JAX reference (mirrors the kernel's bf16-operand / f32-accumulate policy)
# ---------------------------------------------------------------------------
def _mm(a, w_bf16):
    return jnp.dot(a.astype(jnp.bfloat16), w_bf16,
                   preferred_element_type=jnp.float32)


def sbert_reference(x, doy, mask, params, n_heads):
    b, t, _ = x.shape
    pe_g = params["pe_table"][doy]
    obs = _mm(x, params["we"]) + params["be"]
    h = jnp.concatenate([obs, pe_g], axis=-1)
    keymask = (mask > 0)[:, None, None, :]                  # [B,1,1,T]
    hid = h.shape[-1]
    dh = hid // n_heads
    scale = 1.0 / math.sqrt(dh)
    for layer in params["layers"]:
        xn = _layer_norm(h, layer["ln1g"], layer["ln1b"])
        q = _mm(xn, layer["wq"]) + layer["bq"]
        k = _mm(xn, layer["wk"]) + layer["bk"]
        v = _mm(xn, layer["wv"]) + layer["bv"]
        q = q.reshape(b, t, n_heads, dh).transpose(0, 2, 1, 3)
        k = k.reshape(b, t, n_heads, dh).transpose(0, 2, 1, 3)
        v = v.reshape(b, t, n_heads, dh).transpose(0, 2, 1, 3)
        s = jnp.einsum("bhqd,bhkd->bhqk",
                       (q * scale).astype(jnp.bfloat16), k.astype(jnp.bfloat16),
                       preferred_element_type=jnp.float32)
        s = jnp.where(keymask, s, -1e9)
        p = jax.nn.softmax(s, axis=-1)
        o = jnp.einsum("bhqk,bhkd->bhqd",
                       p.astype(jnp.bfloat16), v.astype(jnp.bfloat16),
                       preferred_element_type=jnp.float32)
        o = o.transpose(0, 2, 1, 3).reshape(b, t, hid)
        h = h + _mm(o, layer["wo"]) + layer["bo"]
        xn2 = _layer_norm(h, layer["ln2g"], layer["ln2b"])
        ff = _mm(_gelu_tanh(_mm(xn2, layer["w1"]) + layer["b1"]),
                 layer["w2"]) + layer["b2"]
        h = h + ff
    return h


# ---------------------------------------------------------------------------
# Deterministic parameter construction (weights stored in bf16)
# ---------------------------------------------------------------------------
def make_params(key, num_features, hidden, n_layers, max_doy=366):
    hd2 = hidden // 2
    ff = hidden * 4
    keys = jax.random.split(key, 2 + n_layers)

    def lin(k, fan_in, fan_out):
        w = 0.02 * jax.random.normal(k, (fan_in, fan_out), jnp.float32)
        return w.astype(jnp.bfloat16)

    params = {
        "we": lin(keys[0], num_features, hd2),
        "be": jnp.zeros((1, hd2), jnp.float32),
    }
    # sinusoidal positional-encoding table [max_doy, hidden/2]
    pos = jnp.arange(max_doy, dtype=jnp.float32)[:, None]
    div = jnp.exp(jnp.arange(0, hd2, 2, dtype=jnp.float32)
                  * (-(math.log(10000.0) / hd2)))
    pe = jnp.zeros((max_doy, hd2), jnp.float32)
    pe = pe.at[:, 0::2].set(jnp.sin(pos * div))
    pe = pe.at[:, 1::2].set(jnp.cos(pos * div))
    params["pe_table"] = pe

    layers = []
    for li in range(n_layers):
        lk = jax.random.split(keys[2 + li], 6)
        layers.append({
            "wq": lin(lk[0], hidden, hidden), "bq": jnp.zeros((1, hidden), jnp.float32),
            "wk": lin(lk[1], hidden, hidden), "bk": jnp.zeros((1, hidden), jnp.float32),
            "wv": lin(lk[2], hidden, hidden), "bv": jnp.zeros((1, hidden), jnp.float32),
            "wo": lin(lk[3], hidden, hidden), "bo": jnp.zeros((1, hidden), jnp.float32),
            "ln1g": jnp.ones((1, hidden), jnp.float32),
            "ln1b": jnp.zeros((1, hidden), jnp.float32),
            "w1": lin(lk[4], hidden, ff), "b1": jnp.zeros((1, ff), jnp.float32),
            "w2": lin(lk[5], ff, hidden), "b2": jnp.zeros((1, hidden), jnp.float32),
            "ln2g": jnp.ones((1, hidden), jnp.float32),
            "ln2b": jnp.zeros((1, hidden), jnp.float32),
        })
    params["layers"] = layers
    return params


# ---------------------------------------------------------------------------
if __name__ == "__main__":
    B, T, F = 2, 8, 6          # batch, sequence length, input features
    HIDDEN, N_LAYERS, HEADS = 32, 2, 4

    key = jax.random.PRNGKey(0)
    kx, kd, km, kp = jax.random.split(key, 4)
    x = jax.random.normal(kx, (B, T, F), jnp.float32)
    doy = jax.random.randint(kd, (B, T), 1, 366)            # day-of-year indices
    mask = jax.random.bernoulli(km, 0.8, (B, T)).astype(jnp.int32)
    # guarantee at least one valid key per sequence (avoid all-masked rows)
    mask = mask.at[:, 0].set(1)

    params = make_params(kp, F, HIDDEN, N_LAYERS)

    # batch_block=1: one sequence per grid step along the "parallel" axis so the
    # work can shard across v7x's 2 TensorCores; use batch_block=B on single-TC
    # chips (v5e/v6e) to stream each layer's weights only once.
    out = sbert_forward(x, doy, mask, params, HEADS, batch_block=1)
    out = jax.block_until_ready(out)

    ref = sbert_reference(x, doy, mask, params, HEADS)
    assert out.shape == (B, T, HIDDEN)
    max_err = float(jnp.max(jnp.abs(out - ref)))
    assert jnp.allclose(out, ref, rtol=1e-2, atol=1e-2), max_err

    print("KERNEL_OK")
</pallas_src>

<mosaic_0001>
module attributes {stable_mosaic.version = 11 : i64} {
  func.func @sbert_fused_kernel(%arg0: i32, %arg1: i32, %arg2: memref<8x6xf32, #tpu.memory_space<vmem>>, %arg3: memref<8x16xf32, #tpu.memory_space<vmem>>, %arg4: memref<1x1x8xi32, #tpu.memory_space<vmem>>, %arg5: memref<6x16xbf16, #tpu.memory_space<vmem>>, %arg6: memref<1x16xf32, #tpu.memory_space<vmem>>, %arg7: memref<1x32x96xbf16, #tpu.memory_space<vmem>>, %arg8: memref<1x1x96xf32, #tpu.memory_space<vmem>>, %arg9: memref<1x32x32xbf16, #tpu.memory_space<vmem>>, %arg10: memref<1x1x32xf32, #tpu.memory_space<vmem>>, %arg11: memref<1x1x32xf32, #tpu.memory_space<vmem>>, %arg12: memref<1x1x32xf32, #tpu.memory_space<vmem>>, %arg13: memref<1x32x128xbf16, #tpu.memory_space<vmem>>, %arg14: memref<1x1x128xf32, #tpu.memory_space<vmem>>, %arg15: memref<1x128x32xbf16, #tpu.memory_space<vmem>>, %arg16: memref<1x1x32xf32, #tpu.memory_space<vmem>>, %arg17: memref<1x1x32xf32, #tpu.memory_space<vmem>>, %arg18: memref<1x1x32xf32, #tpu.memory_space<vmem>>, %arg19: memref<8x32xf32, #tpu.memory_space<vmem>>, %arg20: memref<8x32xbf16, #tpu.memory_space<vmem>>) attributes {dimension_semantics = [#tpu.dimension_semantics<parallel>, #tpu.dimension_semantics<arbitrary>], iteration_bounds = array<i64: 2, 2>, scalar_prefetch = 0 : i64, scratch_operands = 1 : i64, tpu.core_type = #tpu.core_type<tc>, window_params = [{transform_indices = @transform_0, window_bounds = array<i64: 8, 6>}, {transform_indices = @transform_1, window_bounds = array<i64: 8, 16>}, {transform_indices = @transform_2, window_bounds = array<i64: 1, 1, 8>}, {pipeline_mode = #tpu.pipeline_mode<synchronous>, transform_indices = @transform_3, window_bounds = array<i64: 6, 16>}, {pipeline_mode = #tpu.pipeline_mode<synchronous>, transform_indices = @transform_4, window_bounds = array<i64: 1, 16>}, {transform_indices = @transform_5, window_bounds = array<i64: 1, 32, 96>}, {transform_indices = @transform_6, window_bounds = array<i64: 1, 1, 96>}, {transform_indices = @transform_7, window_bounds = array<i64: 1, 32, 32>}, {transform_indices = @transform_8, window_bounds = array<i64: 1, 1, 32>}, {transform_indices = @transform_9, window_bounds = array<i64: 1, 1, 32>}, {transform_indices = @transform_10, window_bounds = array<i64: 1, 1, 32>}, {transform_indices = @transform_11, window_bounds = array<i64: 1, 32, 128>}, {transform_indices = @transform_12, window_bounds = array<i64: 1, 1, 128>}, {transform_indices = @transform_13, window_bounds = array<i64: 1, 128, 32>}, {transform_indices = @transform_14, window_bounds = array<i64: 1, 1, 32>}, {transform_indices = @transform_15, window_bounds = array<i64: 1, 1, 32>}, {transform_indices = @transform_16, window_bounds = array<i64: 1, 1, 32>}, {transform_indices = @transform_17, window_bounds = array<i64: 8, 32>}]} {
    %c0_i32 = arith.constant 0 : i32
    %0 = arith.cmpi eq, %arg1, %c0_i32 : i32
    %1 = arith.extui %0 : i1 to i32
    %c0_i32_0 = arith.constant 0 : i32
    %2 = arith.cmpi ne, %1, %c0_i32_0 : i32
    scf.if %2 {
      %c0_94 = arith.constant 0 : index
      %c0_95 = arith.constant 0 : index
      %231 = vector.load %arg2[%c0_94, %c0_95] : memref<8x6xf32, #tpu.memory_space<vmem>>, vector<8x6xf32>
      %232 = arith.truncf %231 : vector<8x6xf32> to vector<8x6xbf16>
      %c0_96 = arith.constant 0 : index
      %c0_97 = arith.constant 0 : index
      %233 = vector.load %arg5[%c0_96, %c0_97] : memref<6x16xbf16, #tpu.memory_space<vmem>>, vector<6x16xbf16>
      %cst_98 = arith.constant dense<0.000000e+00> : vector<8x16xf32>
      %234 = tpu.matmul %232, %233, %cst_98 {dimension_numbers = #tpu.dot_dimension_numbers<[1], [0], [0], [1], [0, 0, 1, 1], [], []>} : vector<8x6xbf16>, vector<6x16xbf16>, vector<8x16xf32> -> vector<8x16xf32>
      %c0_99 = arith.constant 0 : index
      %c0_100 = arith.constant 0 : index
      %235 = vector.load %arg6[%c0_99, %c0_100] : memref<1x16xf32, #tpu.memory_space<vmem>>, vector<1x16xf32>
      %236 = vector.broadcast %235 : vector<1x16xf32> to vector<8x16xf32>
      %237 = arith.addf %234, %236 : vector<8x16xf32>
      %c0_101 = arith.constant 0 : index
      %c0_102 = arith.constant 0 : index
      %238 = vector.load %arg19[%c0_101, %c0_102] : memref<8x32xf32, #tpu.memory_space<vmem>>, vector<8x16xf32>
      tpu.vector_store %arg19[%c0_101, %c0_102], %237 {strides = array<i32>} : memref<8x32xf32, #tpu.memory_space<vmem>>, vector<8x16xf32>,
      %c0_103 = arith.constant 0 : index
      %c0_104 = arith.constant 0 : index
      %239 = vector.load %arg3[%c0_103, %c0_104] : memref<8x16xf32, #tpu.memory_space<vmem>>, vector<8x16xf32>
      %c0_105 = arith.constant 0 : index
      %c16_106 = arith.constant 16 : index
      %240 = vector.load %arg19[%c0_105, %c16_106] : memref<8x32xf32, #tpu.memory_space<vmem>>, vector<8x16xf32>
      tpu.vector_store %arg19[%c0_105, %c16_106], %239 {strides = array<i32>} : memref<8x32xf32, #tpu.memory_space<vmem>>, vector<8x16xf32>,
    } else {
    }
    %c0 = arith.constant 0 : index
    %c0_1 = arith.constant 0 : index
    %3 = vector.load %arg19[%c0, %c0_1] : memref<8x32xf32, #tpu.memory_space<vmem>>, vector<8x32xf32>
    %c0_2 = arith.constant 0 : index
    %c0_3 = arith.constant 0 : index
    %c0_4 = arith.constant 0 : index
    %4 = vector.load %arg11[%c0_2, %c0_3, %c0_4] : memref<1x1x32xf32, #tpu.memory_space<vmem>>, vector<1x1x32xf32>
    %5 = vector.shape_cast %4 : vector<1x1x32xf32> to vector<1x32xf32>
    %c0_5 = arith.constant 0 : index
    %c0_6 = arith.constant 0 : index
    %c0_7 = arith.constant 0 : index
    %6 = vector.load %arg12[%c0_5, %c0_6, %c0_7] : memref<1x1x32xf32, #tpu.memory_space<vmem>>, vector<1x1x32xf32>
    %7 = vector.shape_cast %6 : vector<1x1x32xf32> to vector<1x32xf32>
    %cst = arith.constant dense<0.000000e+00> : vector<8xf32>
    %8 = vector.multi_reduction <add>, %3, %cst [1] : vector<8x32xf32> to vector<8xf32>
    %9 = vector.shape_cast %8 : vector<8xf32> to vector<8x1xf32>
    %cst_8 = arith.constant 3.200000e+01 : f32
    %10 = vector.broadcast %cst_8 : f32 to vector<8x1xf32>
    %11 = arith.divf %9, %10 : vector<8x1xf32>
    %12 = vector.broadcast %11 : vector<8x1xf32> to vector<8x32xf32>
    %13 = arith.subf %3, %12 : vector<8x32xf32>
    %14 = arith.mulf %13, %13 : vector<8x32xf32>
    %cst_9 = arith.constant dense<0.000000e+00> : vector<8xf32>
    %15 = vector.multi_reduction <add>, %14, %cst_9 [1] : vector<8x32xf32> to vector<8xf32>
    %16 = vector.shape_cast %15 : vector<8xf32> to vector<8x1xf32>
    %cst_10 = arith.constant 0.0322580636 : f32
    %17 = vector.broadcast %cst_10 : f32 to vector<8x1xf32>
    %18 = arith.mulf %16, %17 : vector<8x1xf32>
    %19 = math.sqrt %18 : vector<8x1xf32>
    %cst_11 = arith.constant 9.99999997E-7 : f32
    %20 = vector.broadcast %cst_11 : f32 to vector<8x1xf32>
    %21 = arith.addf %19, %20 : vector<8x1xf32>
    %cst_12 = arith.constant 1.000000e+00 : f32
    %22 = vector.broadcast %cst_12 : f32 to vector<8x1xf32>
    %23 = arith.divf %22, %21 : vector<8x1xf32>
    %24 = vector.broadcast %23 : vector<8x1xf32> to vector<8x32xf32>
    %25 = arith.mulf %13, %24 : vector<8x32xf32>
    %26 = vector.broadcast %5 : vector<1x32xf32> to vector<8x32xf32>
    %27 = arith.mulf %26, %25 : vector<8x32xf32>
    %28 = vector.broadcast %7 : vector<1x32xf32> to vector<8x32xf32>
    %29 = arith.addf %27, %28 : vector<8x32xf32>
    %30 = arith.truncf %29 : vector<8x32xf32> to vector<8x32xbf16>
    %c0_13 = arith.constant 0 : index
    %c0_14 = arith.constant 0 : index
    %c0_15 = arith.constant 0 : index
    %31 = vector.load %arg7[%c0_13, %c0_14, %c0_15] : memref<1x32x96xbf16, #tpu.memory_space<vmem>>, vector<1x32x96xbf16>
    %32 = vector.shape_cast %31 : vector<1x32x96xbf16> to vector<32x96xbf16>
    %cst_16 = arith.constant dense<0.000000e+00> : vector<8x96xf32>
    %33 = tpu.matmul %30, %32, %cst_16 {dimension_numbers = #tpu.dot_dimension_numbers<[1], [0], [0], [1], [0, 0, 1, 1], [], []>} : vector<8x32xbf16>, vector<32x96xbf16>, vector<8x96xf32> -> vector<8x96xf32>
    %c0_17 = arith.constant 0 : index
    %c0_18 = arith.constant 0 : index
    %c0_19 = arith.constant 0 : index
    %34 = vector.load %arg8[%c0_17, %c0_18, %c0_19] : memref<1x1x96xf32, #tpu.memory_space<vmem>>, vector<1x1x96xf32>
    %35 = vector.shape_cast %34 : vector<1x1x96xf32> to vector<1x96xf32>
    %36 = vector.broadcast %35 : vector<1x96xf32> to vector<8x96xf32>
    %37 = arith.addf %33, %36 : vector<8x96xf32>
    %c0_20 = arith.constant 0 : index
    %c0_21 = arith.constant 0 : index
    %c0_22 = arith.constant 0 : index
    %38 = vector.load %arg4[%c0_20, %c0_21, %c0_22] : memref<1x1x8xi32, #tpu.memory_space<vmem>>, vector<1x1x8xi32>
    %c0_i32_23 = arith.constant 0 : i32
    %39 = vector.broadcast %c0_i32_23 : i32 to vector<1x1x8xi32>
    %40 = arith.cmpi sgt, %38, %39 : vector<1x1x8xi32>
    %41 = vector.extract_strided_slice %37 {offsets = [0, 0], sizes = [8, 8], strides = [1, 1]} : vector<8x96xf32> to vector<8x8xf32>
    %42 = vector.extract_strided_slice %37 {offsets = [0, 32], sizes = [8, 8], strides = [1, 1]} : vector<8x96xf32> to vector<8x8xf32>
    %43 = vector.extract_strided_slice %37 {offsets = [0, 64], sizes = [8, 8], strides = [1, 1]} : vector<8x96xf32> to vector<8x8xf32>
    %cst_24 = arith.constant 0.353553385 : f32
    %44 = vector.broadcast %cst_24 : f32 to vector<8x8xf32>
    %45 = arith.mulf %41, %44 : vector<8x8xf32>
    %46 = arith.truncf %45 : vector<8x8xf32> to vector<8x8xbf16>
    %47 = vector.shape_cast %46 : vector<8x8xbf16> to vector<1x8x8xbf16>
    %48 = arith.truncf %42 : vector<8x8xf32> to vector<8x8xbf16>
    %49 = vector.shape_cast %48 : vector<8x8xbf16> to vector<1x8x8xbf16>
    %50 = arith.truncf %43 : vector<8x8xf32> to vector<8x8xbf16>
    %51 = vector.shape_cast %50 : vector<8x8xbf16> to vector<1x8x8xbf16>
    "tpu.trace_start"() <{level = 10 : i32, message = "bqd,bkd->bqk"}> : () -> ()
    %cst_25 = arith.constant dense<0.000000e+00> : vector<1x8x8xf32>
    %52 = tpu.matmul %47, %49, %cst_25 {dimension_numbers = #tpu.dot_dimension_numbers<[2], [2], [1], [1], [0, 0, 0, 1, 1, 1], [0], [0]>} : vector<1x8x8xbf16>, vector<1x8x8xbf16>, vector<1x8x8xf32> -> vector<1x8x8xf32>
    %cst_26 = arith.constant -1.000000e+09 : f32
    "tpu.trace_stop"() : () -> ()
    %53 = vector.shape_cast %40 : vector<1x1x8xi1> to vector<1x1x8xi1>
    %54 = vector.broadcast %53 : vector<1x1x8xi1> to vector<1x8x8xi1>
    %55 = vector.broadcast %cst_26 : f32 to vector<1x8x8xf32>
    %56 = arith.select %54, %52, %55 : vector<1x8x8xi1>, vector<1x8x8xf32>
    %cst_27 = arith.constant dense<0xFF800000> : vector<1x8xf32>
    %57 = vector.multi_reduction <maximumf>, %56, %cst_27 [2] : vector<1x8x8xf32> to vector<1x8xf32>
    %58 = vector.shape_cast %57 : vector<1x8xf32> to vector<1x8x1xf32>
    %59 = vector.broadcast %58 : vector<1x8x1xf32> to vector<1x8x8xf32>
    %60 = arith.subf %56, %59 : vector<1x8x8xf32>
    %61 = math.exp %60 : vector<1x8x8xf32>
    %cst_28 = arith.constant dense<0.000000e+00> : vector<1x8xf32>
    %62 = vector.multi_reduction <add>, %61, %cst_28 [2] : vector<1x8x8xf32> to vector<1x8xf32>
    %63 = vector.shape_cast %62 : vector<1x8xf32> to vector<1x8x1xf32>
    %64 = tpu.reciprocal %63 {approx = true} : vector<1x8x1xf32> -> vector<1x8x1xf32>
    %65 = vector.broadcast %64 : vector<1x8x1xf32> to vector<1x8x8xf32>
    %66 = arith.mulf %61, %65 : vector<1x8x8xf32>
    %67 = arith.truncf %66 : vector<1x8x8xf32> to vector<1x8x8xbf16>
    "tpu.trace_start"() <{level = 10 : i32, message = "bqk,bkd->bqd"}> : () -> ()
    %cst_29 = arith.constant dense<0.000000e+00> : vector<1x8x8xf32>
    %68 = tpu.matmul %67, %51, %cst_29 {dimension_numbers = #tpu.dot_dimension_numbers<[2], [1], [1], [2], [0, 0, 0, 1, 1, 2], [0], [0]>} : vector<1x8x8xbf16>, vector<1x8x8xbf16>, vector<1x8x8xf32> -> vector<1x8x8xf32>
    "tpu.trace_stop"() : () -> ()
    %69 = vector.shape_cast %68 : vector<1x8x8xf32> to vector<8x8xf32>
    %70 = arith.truncf %69 : vector<8x8xf32> to vector<8x8xbf16>
    %c0_30 = arith.constant 0 : index
    %c0_31 = arith.constant 0 : index
    %71 = vector.load %arg20[%c0_30, %c0_31] : memref<8x32xbf16, #tpu.memory_space<vmem>>, vector<8x8xbf16>
    tpu.vector_store %arg20[%c0_30, %c0_31], %70 {strides = array<i32>} : memref<8x32xbf16, #tpu.memory_space<vmem>>, vector<8x8xbf16>,
    %72 = vector.extract_strided_slice %37 {offsets = [0, 8], sizes = [8, 8], strides = [1, 1]} : vector<8x96xf32> to vector<8x8xf32>
    %73 = vector.extract_strided_slice %37 {offsets = [0, 40], sizes = [8, 8], strides = [1, 1]} : vector<8x96xf32> to vector<8x8xf32>
    %74 = vector.extract_strided_slice %37 {offsets = [0, 72], sizes = [8, 8], strides = [1, 1]} : vector<8x96xf32> to vector<8x8xf32>
    %cst_32 = arith.constant 0.353553385 : f32
    %75 = vector.broadcast %cst_32 : f32 to vector<8x8xf32>
    %76 = arith.mulf %72, %75 : vector<8x8xf32>
    %77 = arith.truncf %76 : vector<8x8xf32> to vector<8x8xbf16>
    %78 = vector.shape_cast %77 : vector<8x8xbf16> to vector<1x8x8xbf16>
    %79 = arith.truncf %73 : vector<8x8xf32> to vector<8x8xbf16>
    %80 = vector.shape_cast %79 : vector<8x8xbf16> to vector<1x8x8xbf16>
    %81 = arith.truncf %74 : vector<8x8xf32> to vector<8x8xbf16>
    %82 = vector.shape_cast %81 : vector<8x8xbf16> to vector<1x8x8xbf16>
    "tpu.trace_start"() <{level = 10 : i32, message = "bqd,bkd->bqk"}> : () -> ()
    %cst_33 = arith.constant dense<0.000000e+00> : vector<1x8x8xf32>
    %83 = tpu.matmul %78, %80, %cst_33 {dimension_numbers = #tpu.dot_dimension_numbers<[2], [2], [1], [1], [0, 0, 0, 1, 1, 1], [0], [0]>} : vector<1x8x8xbf16>, vector<1x8x8xbf16>, vector<1x8x8xf32> -> vector<1x8x8xf32>
    %cst_34 = arith.constant -1.000000e+09 : f32
    "tpu.trace_stop"() : () -> ()
    %84 = vector.shape_cast %40 : vector<1x1x8xi1> to vector<1x1x8xi1>
    %85 = vector.broadcast %84 : vector<1x1x8xi1> to vector<1x8x8xi1>
    %86 = vector.broadcast %cst_34 : f32 to vector<1x8x8xf32>
    %87 = arith.select %85, %83, %86 : vector<1x8x8xi1>, vector<1x8x8xf32>
    %cst_35 = arith.constant dense<0xFF800000> : vector<1x8xf32>
    %88 = vector.multi_reduction <maximumf>, %87, %cst_35 [2] : vector<1x8x8xf32> to vector<1x8xf32>
    %89 = vector.shape_cast %88 : vector<1x8xf32> to vector<1x8x1xf32>
    %90 = vector.broadcast %89 : vector<1x8x1xf32> to vector<1x8x8xf32>
    %91 = arith.subf %87, %90 : vector<1x8x8xf32>
    %92 = math.exp %91 : vector<1x8x8xf32>
    %cst_36 = arith.constant dense<0.000000e+00> : vector<1x8xf32>
    %93 = vector.multi_reduction <add>, %92, %cst_36 [2] : vector<1x8x8xf32> to vector<1x8xf32>
    %94 = vector.shape_cast %93 : vector<1x8xf32> to vector<1x8x1xf32>
    %95 = tpu.reciprocal %94 {approx = true} : vector<1x8x1xf32> -> vector<1x8x1xf32>
    %96 = vector.broadcast %95 : vector<1x8x1xf32> to vector<1x8x8xf32>
    %97 = arith.mulf %92, %96 : vector<1x8x8xf32>
    %98 = arith.truncf %97 : vector<1x8x8xf32> to vector<1x8x8xbf16>
    "tpu.trace_start"() <{level = 10 : i32, message = "bqk,bkd->bqd"}> : () -> ()
    %cst_37 = arith.constant dense<0.000000e+00> : vector<1x8x8xf32>
    %99 = tpu.matmul %98, %82, %cst_37 {dimension_numbers = #tpu.dot_dimension_numbers<[2], [1], [1], [2], [0, 0, 0, 1, 1, 2], [0], [0]>} : vector<1x8x8xbf16>, vector<1x8x8xbf16>, vector<1x8x8xf32> -> vector<1x8x8xf32>
    "tpu.trace_stop"() : () -> ()
    %100 = vector.shape_cast %99 : vector<1x8x8xf32> to vector<8x8xf32>
    %101 = arith.truncf %100 : vector<8x8xf32> to vector<8x8xbf16>
    %c0_38 = arith.constant 0 : index
    %c8 = arith.constant 8 : index
    %102 = vector.load %arg20[%c0_38, %c8] : memref<8x32xbf16, #tpu.memory_space<vmem>>, vector<8x8xbf16>
    tpu.vector_store %arg20[%c0_38, %c8], %101 {strides = array<i32>} : memref<8x32xbf16, #tpu.memory_space<vmem>>, vector<8x8xbf16>,
    %103 = vector.extract_strided_slice %37 {offsets = [0, 16], sizes = [8, 8], strides = [1, 1]} : vector<8x96xf32> to vector<8x8xf32>
    %104 = vector.extract_strided_slice %37 {offsets = [0, 48], sizes = [8, 8], strides = [1, 1]} : vector<8x96xf32> to vector<8x8xf32>
    %105 = vector.extract_strided_slice %37 {offsets = [0, 80], sizes = [8, 8], strides = [1, 1]} : vector<8x96xf32> to vector<8x8xf32>
    %cst_39 = arith.constant 0.353553385 : f32
    %106 = vector.broadcast %cst_39 : f32 to vector<8x8xf32>
    %107 = arith.mulf %103, %106 : vector<8x8xf32>
    %108 = arith.truncf %107 : vector<8x8xf32> to vector<8x8xbf16>
    %109 = vector.shape_cast %108 : vector<8x8xbf16> to vector<1x8x8xbf16>
    %110 = arith.truncf %104 : vector<8x8xf32> to vector<8x8xbf16>
    %111 = vector.shape_cast %110 : vector<8x8xbf16> to vector<1x8x8xbf16>
    %112 = arith.truncf %105 : vector<8x8xf32> to vector<8x8xbf16>
    %113 = vector.shape_cast %112 : vector<8x8xbf16> to vector<1x8x8xbf16>
    "tpu.trace_start"() <{level = 10 : i32, message = "bqd,bkd->bqk"}> : () -> ()
    %cst_40 = arith.constant dense<0.000000e+00> : vector<1x8x8xf32>
    %114 = tpu.matmul %109, %111, %cst_40 {dimension_numbers = #tpu.dot_dimension_numbers<[2], [2], [1], [1], [0, 0, 0, 1, 1, 1], [0], [0]>} : vector<1x8x8xbf16>, vector<1x8x8xbf16>, vector<1x8x8xf32> -> vector<1x8x8xf32>
    %cst_41 = arith.constant -1.000000e+09 : f32
    "tpu.trace_stop"() : () -> ()
    %115 = vector.shape_cast %40 : vector<1x1x8xi1> to vector<1x1x8xi1>
    %116 = vector.broadcast %115 : vector<1x1x8xi1> to vector<1x8x8xi1>
    %117 = vector.broadcast %cst_41 : f32 to vector<1x8x8xf32>
    %118 = arith.select %116, %114, %117 : vector<1x8x8xi1>, vector<1x8x8xf32>
    %cst_42 = arith.constant dense<0xFF800000> : vector<1x8xf32>
    %119 = vector.multi_reduction <maximumf>, %118, %cst_42 [2] : vector<1x8x8xf32> to vector<1x8xf32>
    %120 = vector.shape_cast %119 : vector<1x8xf32> to vector<1x8x1xf32>
    %121 = vector.broadcast %120 : vector<1x8x1xf32> to vector<1x8x8xf32>
    %122 = arith.subf %118, %121 : vector<1x8x8xf32>
    %123 = math.exp %122 : vector<1x8x8xf32>
    %cst_43 = arith.constant dense<0.000000e+00> : vector<1x8xf32>
    %124 = vector.multi_reduction <add>, %123, %cst_43 [2] : vector<1x8x8xf32> to vector<1x8xf32>
    %125 = vector.shape_cast %124 : vector<1x8xf32> to vector<1x8x1xf32>
    %126 = tpu.reciprocal %125 {approx = true} : vector<1x8x1xf32> -> vector<1x8x1xf32>
    %127 = vector.broadcast %126 : vector<1x8x1xf32> to vector<1x8x8xf32>
    %128 = arith.mulf %123, %127 : vector<1x8x8xf32>
    %129 = arith.truncf %128 : vector<1x8x8xf32> to vector<1x8x8xbf16>
    "tpu.trace_start"() <{level = 10 : i32, message = "bqk,bkd->bqd"}> : () -> ()
    %cst_44 = arith.constant dense<0.000000e+00> : vector<1x8x8xf32>
    %130 = tpu.matmul %129, %113, %cst_44 {dimension_numbers = #tpu.dot_dimension_numbers<[2], [1], [1], [2], [0, 0, 0, 1, 1, 2], [0], [0]>} : vector<1x8x8xbf16>, vector<1x8x8xbf16>, vector<1x8x8xf32> -> vector<1x8x8xf32>
    "tpu.trace_stop"() : () -> ()
    %131 = vector.shape_cast %130 : vector<1x8x8xf32> to vector<8x8xf32>
    %132 = arith.truncf %131 : vector<8x8xf32> to vector<8x8xbf16>
    %c0_45 = arith.constant 0 : index
    %c16 = arith.constant 16 : index
    %133 = vector.load %arg20[%c0_45, %c16] : memref<8x32xbf16, #tpu.memory_space<vmem>>, vector<8x8xbf16>
    tpu.vector_store %arg20[%c0_45, %c16], %132 {strides = array<i32>} : memref<8x32xbf16, #tpu.memory_space<vmem>>, vector<8x8xbf16>,
    %134 = vector.extract_strided_slice %37 {offsets = [0, 24], sizes = [8, 8], strides = [1, 1]} : vector<8x96xf32> to vector<8x8xf32>
    %135 = vector.extract_strided_slice %37 {offsets = [0, 56], sizes = [8, 8], strides = [1, 1]} : vector<8x96xf32> to vector<8x8xf32>
    %136 = vector.extract_strided_slice %37 {offsets = [0, 88], sizes = [8, 8], strides = [1, 1]} : vector<8x96xf32> to vector<8x8xf32>
    %cst_46 = arith.constant 0.353553385 : f32
    %137 = vector.broadcast %cst_46 : f32 to vector<8x8xf32>
    %138 = arith.mulf %134, %137 : vector<8x8xf32>
    %139 = arith.truncf %138 : vector<8x8xf32> to vector<8x8xbf16>
    %140 = vector.shape_cast %139 : vector<8x8xbf16> to vector<1x8x8xbf16>
    %141 = arith.truncf %135 : vector<8x8xf32> to vector<8x8xbf16>
    %142 = vector.shape_cast %141 : vector<8x8xbf16> to vector<1x8x8xbf16>
    %143 = arith.truncf %136 : vector<8x8xf32> to vector<8x8xbf16>
    %144 = vector.shape_cast %143 : vector<8x8xbf16> to vector<1x8x8xbf16>
    "tpu.trace_start"() <{level = 10 : i32, message = "bqd,bkd->bqk"}> : () -> ()
    %cst_47 = arith.constant dense<0.000000e+00> : vector<1x8x8xf32>
    %145 = tpu.matmul %140, %142, %cst_47 {dimension_numbers = #tpu.dot_dimension_numbers<[2], [2], [1], [1], [0, 0, 0, 1, 1, 1], [0], [0]>} : vector<1x8x8xbf16>, vector<1x8x8xbf16>, vector<1x8x8xf32> -> vector<1x8x8xf32>
    %cst_48 = arith.constant -1.000000e+09 : f32
    "tpu.trace_stop"() : () -> ()
    %146 = vector.shape_cast %40 : vector<1x1x8xi1> to vector<1x1x8xi1>
    %147 = vector.broadcast %146 : vector<1x1x8xi1> to vector<1x8x8xi1>
    %148 = vector.broadcast %cst_48 : f32 to vector<1x8x8xf32>
    %149 = arith.select %147, %145, %148 : vector<1x8x8xi1>, vector<1x8x8xf32>
    %cst_49 = arith.constant dense<0xFF800000> : vector<1x8xf32>
    %150 = vector.multi_reduction <maximumf>, %149, %cst_49 [2] : vector<1x8x8xf32> to vector<1x8xf32>
    %151 = vector.shape_cast %150 : vector<1x8xf32> to vector<1x8x1xf32>
    %152 = vector.broadcast %151 : vector<1x8x1xf32> to vector<1x8x8xf32>
    %153 = arith.subf %149, %152 : vector<1x8x8xf32>
    %154 = math.exp %153 : vector<1x8x8xf32>
    %cst_50 = arith.constant dense<0.000000e+00> : vector<1x8xf32>
    %155 = vector.multi_reduction <add>, %154, %cst_50 [2] : vector<1x8x8xf32> to vector<1x8xf32>
    %156 = vector.shape_cast %155 : vector<1x8xf32> to vector<1x8x1xf32>
    %157 = tpu.reciprocal %156 {approx = true} : vector<1x8x1xf32> -> vector<1x8x1xf32>
    %158 = vector.broadcast %157 : vector<1x8x1xf32> to vector<1x8x8xf32>
    %159 = arith.mulf %154, %158 : vector<1x8x8xf32>
    %160 = arith.truncf %159 : vector<1x8x8xf32> to vector<1x8x8xbf16>
    "tpu.trace_start"() <{level = 10 : i32, message = "bqk,bkd->bqd"}> : () -> ()
    %cst_51 = arith.constant dense<0.000000e+00> : vector<1x8x8xf32>
    %161 = tpu.matmul %160, %144, %cst_51 {dimension_numbers = #tpu.dot_dimension_numbers<[2], [1], [1], [2], [0, 0, 0, 1, 1, 2], [0], [0]>} : vector<1x8x8xbf16>, vector<1x8x8xbf16>, vector<1x8x8xf32> -> vector<1x8x8xf32>
    "tpu.trace_stop"() : () -> ()
    %162 = vector.shape_cast %161 : vector<1x8x8xf32> to vector<8x8xf32>
    %163 = arith.truncf %162 : vector<8x8xf32> to vector<8x8xbf16>
    %c0_52 = arith.constant 0 : index
    %c24 = arith.constant 24 : index
    %164 = vector.load %arg20[%c0_52, %c24] : memref<8x32xbf16, #tpu.memory_space<vmem>>, vector<8x8xbf16>
    tpu.vector_store %arg20[%c0_52, %c24], %163 {strides = array<i32>} : memref<8x32xbf16, #tpu.memory_space<vmem>>, vector<8x8xbf16>,
    %c0_53 = arith.constant 0 : index
    %c0_54 = arith.constant 0 : index
    %165 = vector.load %arg20[%c0_53, %c0_54] : memref<8x32xbf16, #tpu.memory_space<vmem>>, vector<8x32xbf16>
    %c0_55 = arith.constant 0 : index
    %c0_56 = arith.constant 0 : index
    %c0_57 = arith.constant 0 : index
    %166 = vector.load %arg9[%c0_55, %c0_56, %c0_57] : memref<1x32x32xbf16, #tpu.memory_space<vmem>>, vector<1x32x32xbf16>
    %167 = vector.shape_cast %166 : vector<1x32x32xbf16> to vector<32x32xbf16>
    %cst_58 = arith.constant dense<0.000000e+00> : vector<8x32xf32>
    %168 = tpu.matmul %165, %167, %cst_58 {dimension_numbers = #tpu.dot_dimension_numbers<[1], [0], [0], [1], [0, 0, 1, 1], [], []>} : vector<8x32xbf16>, vector<32x32xbf16>, vector<8x32xf32> -> vector<8x32xf32>
    %c0_59 = arith.constant 0 : index
    %c0_60 = arith.constant 0 : index
    %c0_61 = arith.constant 0 : index
    %169 = vector.load %arg10[%c0_59, %c0_60, %c0_61] : memref<1x1x32xf32, #tpu.memory_space<vmem>>, vector<1x1x32xf32>
    %170 = vector.shape_cast %169 : vector<1x1x32xf32> to vector<1x32xf32>
    %171 = vector.broadcast %170 : vector<1x32xf32> to vector<8x32xf32>
    %172 = arith.addf %168, %171 : vector<8x32xf32>
    %173 = arith.addf %3, %172 : vector<8x32xf32>
    %c0_62 = arith.constant 0 : index
    %c0_63 = arith.constant 0 : index
    %c0_64 = arith.constant 0 : index
    %174 = vector.load %arg17[%c0_62, %c0_63, %c0_64] : memref<1x1x32xf32, #tpu.memory_space<vmem>>, vector<1x1x32xf32>
    %175 = vector.shape_cast %174 : vector<1x1x32xf32> to vector<1x32xf32>
    %c0_65 = arith.constant 0 : index
    %c0_66 = arith.constant 0 : index
    %c0_67 = arith.constant 0 : index
    %176 = vector.load %arg18[%c0_65, %c0_66, %c0_67] : memref<1x1x32xf32, #tpu.memory_space<vmem>>, vector<1x1x32xf32>
    %177 = vector.shape_cast %176 : vector<1x1x32xf32> to vector<1x32xf32>
    %cst_68 = arith.constant dense<0.000000e+00> : vector<8xf32>
    %178 = vector.multi_reduction <add>, %173, %cst_68 [1] : vector<8x32xf32> to vector<8xf32>
    %179 = vector.shape_cast %178 : vector<8xf32> to vector<8x1xf32>
    %cst_69 = arith.constant 3.200000e+01 : f32
    %180 = vector.broadcast %cst_69 : f32 to vector<8x1xf32>
    %181 = arith.divf %179, %180 : vector<8x1xf32>
    %182 = vector.broadcast %181 : vector<8x1xf32> to vector<8x32xf32>
    %183 = arith.subf %173, %182 : vector<8x32xf32>
    %184 = arith.mulf %183, %183 : vector<8x32xf32>
    %cst_70 = arith.constant dense<0.000000e+00> : vector<8xf32>
    %185 = vector.multi_reduction <add>, %184, %cst_70 [1] : vector<8x32xf32> to vector<8xf32>
    %186 = vector.shape_cast %185 : vector<8xf32> to vector<8x1xf32>
    %cst_71 = arith.constant 0.0322580636 : f32
    %187 = vector.broadcast %cst_71 : f32 to vector<8x1xf32>
    %188 = arith.mulf %186, %187 : vector<8x1xf32>
    %189 = math.sqrt %188 : vector<8x1xf32>
    %cst_72 = arith.constant 9.99999997E-7 : f32
    %190 = vector.broadcast %cst_72 : f32 to vector<8x1xf32>
    %191 = arith.addf %189, %190 : vector<8x1xf32>
    %cst_73 = arith.constant 1.000000e+00 : f32
    %192 = vector.broadcast %cst_73 : f32 to vector<8x1xf32>
    %193 = arith.divf %192, %191 : vector<8x1xf32>
    %194 = vector.broadcast %193 : vector<8x1xf32> to vector<8x32xf32>
    %195 = arith.mulf %183, %194 : vector<8x32xf32>
    %196 = vector.broadcast %175 : vector<1x32xf32> to vector<8x32xf32>
    %197 = arith.mulf %196, %195 : vector<8x32xf32>
    %198 = vector.broadcast %177 : vector<1x32xf32> to vector<8x32xf32>
    %199 = arith.addf %197, %198 : vector<8x32xf32>
    %200 = arith.truncf %199 : vector<8x32xf32> to vector<8x32xbf16>
    %c0_74 = arith.constant 0 : index
    %c0_75 = arith.constant 0 : index
    %c0_76 = arith.constant 0 : index
    %201 = vector.load %arg13[%c0_74, %c0_75, %c0_76] : memref<1x32x128xbf16, #tpu.memory_space<vmem>>, vector<1x32x128xbf16>
    %202 = vector.shape_cast %201 : vector<1x32x128xbf16> to vector<32x128xbf16>
    %cst_77 = arith.constant dense<0.000000e+00> : vector<8x128xf32>
    %203 = tpu.matmul %200, %202, %cst_77 {dimension_numbers = #tpu.dot_dimension_numbers<[1], [0], [0], [1], [0, 0, 1, 1], [], []>} : vector<8x32xbf16>, vector<32x128xbf16>, vector<8x128xf32> -> vector<8x128xf32>
    %c0_78 = arith.constant 0 : index
    %c0_79 = arith.constant 0 : index
    %c0_80 = arith.constant 0 : index
    %204 = vector.load %arg14[%c0_78, %c0_79, %c0_80] : memref<1x1x128xf32, #tpu.memory_space<vmem>>, vector<1x1x128xf32>
    %205 = vector.shape_cast %204 : vector<1x1x128xf32> to vector<1x128xf32>
    %206 = vector.broadcast %205 : vector<1x128xf32> to vector<8x128xf32>
    %207 = arith.addf %203, %206 : vector<8x128xf32>
    %cst_81 = arith.constant 5.000000e-01 : f32
    %208 = vector.broadcast %cst_81 : f32 to vector<8x128xf32>
    %209 = arith.mulf %208, %207 : vector<8x128xf32>
    %cst_82 = arith.constant 4.471500e-02 : f32
    %210 = vector.broadcast %cst_82 : f32 to vector<8x128xf32>
    %211 = arith.mulf %210, %207 : vector<8x128xf32>
    %212 = arith.mulf %211, %207 : vector<8x128xf32>
    %213 = arith.mulf %212, %207 : vector<8x128xf32>
    %214 = arith.addf %207, %213 : vector<8x128xf32>
    %cst_83 = arith.constant 0.797884583 : f32
    %215 = vector.broadcast %cst_83 : f32 to vector<8x128xf32>
    %216 = arith.mulf %215, %214 : vector<8x128xf32>
    %217 = math.tanh %216 : vector<8x128xf32>
    %cst_84 = arith.constant 1.000000e+00 : f32
    %218 = vector.broadcast %cst_84 : f32 to vector<8x128xf32>
    %219 = arith.addf %218, %217 : vector<8x128xf32>
    %220 = arith.mulf %209, %219 : vector<8x128xf32>
    %221 = arith.truncf %220 : vector<8x128xf32> to vector<8x128xbf16>
    %c0_85 = arith.constant 0 : index
    %c0_86 = arith.constant 0 : index
    %c0_87 = arith.constant 0 : index
    %222 = vector.load %arg15[%c0_85, %c0_86, %c0_87] : memref<1x128x32xbf16, #tpu.memory_space<vmem>>, vector<1x128x32xbf16>
    %223 = vector.shape_cast %222 : vector<1x128x32xbf16> to vector<128x32xbf16>
    %cst_88 = arith.constant dense<0.000000e+00> : vector<8x32xf32>
    %224 = tpu.matmul %221, %223, %cst_88 {dimension_numbers = #tpu.dot_dimension_numbers<[1], [0], [0], [1], [0, 0, 1, 1], [], []>} : vector<8x128xbf16>, vector<128x32xbf16>, vector<8x32xf32> -> vector<8x32xf32>
    %c0_89 = arith.constant 0 : index
    %c0_90 = arith.constant 0 : index
    %c0_91 = arith.constant 0 : index
    %225 = vector.load %arg16[%c0_89, %c0_90, %c0_91] : memref<1x1x32xf32, #tpu.memory_space<vmem>>, vector<1x1x32xf32>
    %226 = vector.shape_cast %225 : vector<1x1x32xf32> to vector<1x32xf32>
    %227 = vector.broadcast %226 : vector<1x32xf32> to vector<8x32xf32>
    %228 = arith.addf %224, %227 : vector<8x32xf32>
    %229 = arith.addf %173, %228 : vector<8x32xf32>
    %c0_92 = arith.constant 0 : index
    %c0_93 = arith.constant 0 : index
    %230 = vector.load %arg19[%c0_92, %c0_93] : memref<8x32xf32, #tpu.memory_space<vmem>>, vector<8x32xf32>
    tpu.vector_store %arg19[%c0_92, %c0_93], %229 {strides = array<i32>} : memref<8x32xf32, #tpu.memory_space<vmem>>, vector<8x32xf32>,
    return
  }
  func.func @transform_0(%arg0: i32, %arg1: i32) -> (i32, i32) {
    %c0_i32 = arith.constant 0 : i32
    %c0_i32_0 = arith.constant 0 : i32
    return %arg0, %c0_i32 : i32, i32
  }
  func.func @transform_1(%arg0: i32, %arg1: i32) -> (i32, i32) {
    %c0_i32 = arith.constant 0 : i32
    %c0_i32_0 = arith.constant 0 : i32
    return %arg0, %c0_i32 : i32, i32
  }
  func.func @transform_2(%arg0: i32, %arg1: i32) -> (i32, i32, i32) {
    %c0_i32 = arith.constant 0 : i32
    %c0_i32_0 = arith.constant 0 : i32
    %c0_i32_1 = arith.constant 0 : i32
    return %arg0, %c0_i32, %c0_i32_0 : i32, i32, i32
  }
  func.func @transform_3(%arg0: i32, %arg1: i32) -> (i32, i32) {
    %c0_i32 = arith.constant 0 : i32
    %c0_i32_0 = arith.constant 0 : i32
    %c0_i32_1 = arith.constant 0 : i32
    return %c0_i32, %c0_i32_0 : i32, i32
  }
  func.func @transform_4(%arg0: i32, %arg1: i32) -> (i32, i32) {
    %c0_i32 = arith.constant 0 : i32
    %c0_i32_0 = arith.constant 0 : i32
    %c0_i32_1 = arith.constant 0 : i32
    return %c0_i32, %c0_i32_0 : i32, i32
  }
  func.func @transform_5(%arg0: i32, %arg1: i32) -> (i32, i32, i32) {
    %c0_i32 = arith.constant 0 : i32
    %c0_i32_0 = arith.constant 0 : i32
    %c0_i32_1 = arith.constant 0 : i32
    return %arg1, %c0_i32, %c0_i32_0 : i32, i32, i32
  }
  func.func @transform_6(%arg0: i32, %arg1: i32) -> (i32, i32, i32) {
    %c0_i32 = arith.constant 0 : i32
    %c0_i32_0 = arith.constant 0 : i32
    %c0_i32_1 = arith.constant 0 : i32
    return %arg1, %c0_i32, %c0_i32_0 : i32, i32, i32
  }
  func.func @transform_7(%arg0: i32, %arg1: i32) -> (i32, i32, i32) {
    %c0_i32 = arith.constant 0 : i32
    %c0_i32_0 = arith.constant 0 : i32
    %c0_i32_1 = arith.constant 0 : i32
    return %arg1, %c0_i32, %c0_i32_0 : i32, i32, i32
  }
  func.func @transform_8(%arg0: i32, %arg1: i32) -> (i32, i32, i32) {
    %c0_i32 = arith.constant 0 : i32
    %c0_i32_0 = arith.constant 0 : i32
    %c0_i32_1 = arith.constant 0 : i32
    return %arg1, %c0_i32, %c0_i32_0 : i32, i32, i32
  }
  func.func @transform_9(%arg0: i32, %arg1: i32) -> (i32, i32, i32) {
    %c0_i32 = arith.constant 0 : i32
    %c0_i32_0 = arith.constant 0 : i32
    %c0_i32_1 = arith.constant 0 : i32
    return %arg1, %c0_i32, %c0_i32_0 : i32, i32, i32
  }
  func.func @transform_10(%arg0: i32, %arg1: i32) -> (i32, i32, i32) {
    %c0_i32 = arith.constant 0 : i32
    %c0_i32_0 = arith.constant 0 : i32
    %c0_i32_1 = arith.constant 0 : i32
    return %arg1, %c0_i32, %c0_i32_0 : i32, i32, i32
  }
  func.func @transform_11(%arg0: i32, %arg1: i32) -> (i32, i32, i32) {
    %c0_i32 = arith.constant 0 : i32
    %c0_i32_0 = arith.constant 0 : i32
    %c0_i32_1 = arith.constant 0 : i32
    return %arg1, %c0_i32, %c0_i32_0 : i32, i32, i32
  }
  func.func @transform_12(%arg0: i32, %arg1: i32) -> (i32, i32, i32) {
    %c0_i32 = arith.constant 0 : i32
    %c0_i32_0 = arith.constant 0 : i32
    %c0_i32_1 = arith.constant 0 : i32
    return %arg1, %c0_i32, %c0_i32_0 : i32, i32, i32
  }
  func.func @transform_13(%arg0: i32, %arg1: i32) -> (i32, i32, i32) {
    %c0_i32 = arith.constant 0 : i32
    %c0_i32_0 = arith.constant 0 : i32
    %c0_i32_1 = arith.constant 0 : i32
    return %arg1, %c0_i32, %c0_i32_0 : i32, i32, i32
  }
  func.func @transform_14(%arg0: i32, %arg1: i32) -> (i32, i32, i32) {
    %c0_i32 = arith.constant 0 : i32
    %c0_i32_0 = arith.constant 0 : i32
    %c0_i32_1 = arith.constant 0 : i32
    return %arg1, %c0_i32, %c0_i32_0 : i32, i32, i32
  }
  func.func @transform_15(%arg0: i32, %arg1: i32) -> (i32, i32, i32) {
    %c0_i32 = arith.constant 0 : i32
    %c0_i32_0 = arith.constant 0 : i32
    %c0_i32_1 = arith.constant 0 : i32
    return %arg1, %c0_i32, %c0_i32_0 : i32, i32, i32
  }
  func.func @transform_16(%arg0: i32, %arg1: i32) -> (i32, i32, i32) {
    %c0_i32 = arith.constant 0 : i32
    %c0_i32_0 = arith.constant 0 : i32
    %c0_i32_1 = arith.constant 0 : i32
    return %arg1, %c0_i32, %c0_i32_0 : i32, i32, i32
  }
  func.func @transform_17(%arg0: i32, %arg1: i32) -> (i32, i32) {
    %c0_i32 = arith.constant 0 : i32
    %c0_i32_0 = arith.constant 0 : i32
    return %arg0, %c0_i32 : i32, i32
  }
}

</mosaic_0001>

<llo_original>
// kernel: tpu_custom_call.1
$region0: #{tpu_custom_call.1}
  #allocation0 [shape = 'u32[]', space=smem, size = 0x4, offset = 0x4, fixed_abs, tag = 'smem constant byte address 0x4 - core index']
  #allocation1 [shape = 'u32[144,128]{1,0:T(1,128)}', space=vmem, size = 0x12000, scoped, tag = 'internal scratch']
  #allocation2 [shape = 'bf16[8,32]{1,0:T(8,128)(2,1)}', space=vmem, size = 0x800, scoped, tag = 'scratch operand']
  %s0 = inlined_call_operand.vmem [shape: f32[16,6], index: 0, kind: input, shape index: {}]
  %s1 = inlined_call_operand.vmem [shape: f32[16,16], index: 1, kind: input, shape index: {}]
  %s2 = inlined_call_operand.vmem [shape: s32[2,1,8], index: 2, kind: input, shape index: {}]
  %s3 = inlined_call_operand.vmem [shape: bf16[6,16], index: 3, kind: input, shape index: {}]
  %s4 = inlined_call_operand.vmem [shape: f32[1,16], index: 4, kind: input, shape index: {}]
  %s5 = inlined_call_operand.vmem [shape: bf16[2,32,96], index: 5, kind: input, shape index: {}]
  %s6 = inlined_call_operand.vmem [shape: f32[2,1,96], index: 6, kind: input, shape index: {}]
  %s7 = inlined_call_operand.vmem [shape: bf16[2,32,32], index: 7, kind: input, shape index: {}]
  %s8 = inlined_call_operand.vmem [shape: f32[2,1,32], index: 8, kind: input, shape index: {}]
  %s9 = inlined_call_operand.vmem [shape: f32[2,1,32], index: 9, kind: input, shape index: {}]
  %s10 = inlined_call_operand.vmem [shape: f32[2,1,32], index: 10, kind: input, shape index: {}]
  %s11 = inlined_call_operand.vmem [shape: bf16[2,32,128], index: 11, kind: input, shape index: {}]
  %s12 = inlined_call_operand.vmem [shape: f32[2,1,128], index: 12, kind: input, shape index: {}]
  %s13 = inlined_call_operand.vmem [shape: bf16[2,128,32], index: 13, kind: input, shape index: {}]
  %s14 = inlined_call_operand.vmem [shape: f32[2,1,32], index: 14, kind: input, shape index: {}]
  %s15 = inlined_call_operand.vmem [shape: f32[2,1,32], index: 15, kind: input, shape index: {}]
  %s16 = inlined_call_operand.vmem [shape: f32[2,1,32], index: 16, kind: input, shape index: {}]
  %s17 = inlined_call_operand.hbm [shape: f32[16,32], index: 17, kind: output, shape index: {}]
  %s18 = sld [smem:[#allocation0]]
  $region105: #{tpu_custom_call.1} parent=0
    _
  %s20 = ssub.s32 1, %s18
  %s21 = scalar_select 0, %s20, %s18
  $region1: #{tpu_custom_call.1} parent=0
    #allocation3 [shape = 'u8[8192]{0}', space=vmem, size = 0x2000, scoped, tag = 'output window, operand 0']
    #allocation4 [shape = 's32[2]{0}', space=sflag, size = 0x8, scoped, tag = 'scoped memory for tpu_custom_call.1']
    %22 = vsyncpa [#allocation4], 0
    %s23 = scalar_lea.sflag [#allocation4], 1
    %24 = vsyncpa %s23, 0
    loop: start=0, step=1, limit=6
    $region2: #{tpu_custom_call.1} parent=1 // loop_pre_header
      _
    $region3: #{tpu_custom_call.1} parent=1 // loop_header
      %s26 = sphi 0, %s30
      %p27 = scmp.ge.s32.totalorder %s26, 6
      %s33 = sphi 0, %s45
      %s34 = sphi 0, %s41
      %s35 = sphi 0, %s33
      %s36 = sphi 0, %s34
      %s37 = sphi 0, %s35
      %s38 = sphi 0, %s36
      %s48 = sphi 0, %s50
      %s51 = sphi 0, %s48
      %s52 = sphi 0, %s51
      %s68 = sphi 0, %s52
      %s74 = sphi 0, %s76
      %s77 = sphi 0, %s74
      %s78 = sphi 0, %s77
      %s94 = sphi 0, %s78
      %s100 = sphi 0, %s102
      %s103 = sphi 0, %s100
      %s104 = sphi 0, %s103
      %s120 = sphi 0, %s104
      %s124 = sphi 0, %s124
      %s126 = sphi 0, %s124
      %s127 = sphi 0, %s126
      %s141 = sphi 0, %s127
      %s145 = sphi 0, %s145
      %s147 = sphi 0, %s145
      %s148 = sphi 0, %s147
      %s162 = sphi 0, %s148
      %s168 = sphi 0, %s170
      %s171 = sphi 0, %s168
      %s172 = sphi 0, %s171
      %s188 = sphi 0, %s172
      %s194 = sphi 0, %s196
      %s197 = sphi 0, %s194
      %s198 = sphi 0, %s197
      %s214 = sphi 0, %s198
      %s220 = sphi 0, %s222
      %s223 = sphi 0, %s220
      %s224 = sphi 0, %s223
      %s240 = sphi 0, %s224
      %s246 = sphi 0, %s248
      %s249 = sphi 0, %s246
      %s250 = sphi 0, %s249
      %s266 = sphi 0, %s250
      %s272 = sphi 0, %s274
      %s275 = sphi 0, %s272
      %s276 = sphi 0, %s275
      %s292 = sphi 0, %s276
      %s298 = sphi 0, %s300
      %s301 = sphi 0, %s298
      %s302 = sphi 0, %s301
      %s318 = sphi 0, %s302
      %s324 = sphi 0, %s326
      %s327 = sphi 0, %s324
      %s328 = sphi 0, %s327
      %s344 = sphi 0, %s328
      %s350 = sphi 0, %s352
      %s353 = sphi 0, %s350
      %s354 = sphi 0, %s353
      %s370 = sphi 0, %s354
      %s376 = sphi 0, %s378
      %s379 = sphi 0, %s376
      %s380 = sphi 0, %s379
      %s396 = sphi 0, %s380
      %s402 = sphi 0, %s404
      %s405 = sphi 0, %s402
      %s406 = sphi 0, %s405
      %s422 = sphi 0, %s406
      %s428 = sphi 0, %s430
      %s431 = sphi 0, %s428
      %s432 = sphi 0, %s431
      %s448 = sphi 0, %s432
      %s454 = sphi 0, %s456
      %s457 = sphi 0, %s454
      %s458 = sphi 0, %s457
      %s474 = sphi 0, %s458
      %s480 = sphi 0, %s482
      %s483 = sphi 0, %s480
      %s484 = sphi 0, %s483
      %s500 = sphi 0, %s484
    $region4: #{tpu_custom_call.1} parent=1 // loop_header_branch
      %29 = sbr.rel (%p27) target = $region8
    $region5: #{tpu_custom_call.1} parent=1 // loop_body
      %s31 = ssub.s32 %s26, 1
      %s32 = ssub.s32 %s26, 2
      %s39 = sadd.s32 1, %s34
      %p40 = scmp.ge.s32.totalorder %s39, 2
      %s41 = scalar_select %p40, 0, %s39
      %s42 = sadd.s32 1, %s33
      %s43 = scalar_select %p40, %s42, %s33
      %p44 = scmp.ge.s32.totalorder %s43, 2
      %s45 = scalar_select %p44, 0, %s43
      %s46 = ssub.s32 %s33, %s45
      %p47 = scmp.eq.s32.totalorder %s46, 0
      %s49 = sadd.s32 %s48, 1
      %s50 = scalar_select %p47, %s48, %s49
      %p53 = pneg %p47
      %p54 = scmp.eq.s32.totalorder %s26, 3
      %p55 = por %p53, %p54
      %p56 = scmp.ne.s32.totalorder %s48, %s51
      %p57 = scmp.eq.s32.totalorder %s26, 0
      %p58 = por %p56, %p57
      %p59 = scmp.ne.s32.totalorder %s48, %s51
      %p60 = scmp.eq.s32.totalorder %s31, 3
      %p61 = por %p59, %p60
      %p62 = scmp.ne.s32.totalorder %s51, %s52
      %p63 = scmp.eq.s32.totalorder %s31, 0
      %p64 = por %p62, %p63
      %p65 = scmp.ne.s32.totalorder %s51, %s52
      %p66 = scmp.eq.s32.totalorder %s32, 3
      %p67 = por %p65, %p66
      %p69 = scmp.ne.s32.totalorder %s52, %s68
      %p70 = scmp.eq.s32.totalorder %s32, 0
      %p71 = por %p69, %p70
      %s72 = ssub.s32 %s33, %s45
      %p73 = scmp.eq.s32.totalorder %s72, 0
      %s75 = sadd.s32 %s74, 1
      %s76 = scalar_select %p73, %s74, %s75
      %p79 = pneg %p73
      %p80 = scmp.eq.s32.totalorder %s26, 3
      %p81 = por %p79, %p80
      %p82 = scmp.ne.s32.totalorder %s74, %s77
      %p83 = scmp.eq.s32.totalorder %s26, 0
      %p84 = por %p82, %p83
      %p85 = scmp.ne.s32.totalorder %s74, %s77
      %p86 = scmp.eq.s32.totalorder %s31, 3
      %p87 = por %p85, %p86
      %p88 = scmp.ne.s32.totalorder %s77, %s78
      %p89 = scmp.eq.s32.totalorder %s31, 0
      %p90 = por %p88, %p89
      %p91 = scmp.ne.s32.totalorder %s77, %s78
      %p92 = scmp.eq.s32.totalorder %s32, 3
      %p93 = por %p91, %p92
      %p95 = scmp.ne.s32.totalorder %s78, %s94
      %p96 = scmp.eq.s32.totalorder %s32, 0
      %p97 = por %p95, %p96
      %s98 = ssub.s32 %s33, %s45
      %p99 = scmp.eq.s32.totalorder %s98, 0
      %s101 = sadd.s32 %s100, 1
      %s102 = scalar_select %p99, %s100, %s101
      %p105 = pneg %p99
      %p106 = scmp.eq.s32.totalorder %s26, 3
      %p107 = por %p105, %p106
      %p108 = scmp.ne.s32.totalorder %s100, %s103
      %p109 = scmp.eq.s32.totalorder %s26, 0
      %p110 = por %p108, %p109
      %p111 = scmp.ne.s32.totalorder %s100, %s103
      %p112 = scmp.eq.s32.totalorder %s31, 3
      %p113 = por %p111, %p112
      %p114 = scmp.ne.s32.totalorder %s103, %s104
      %p115 = scmp.eq.s32.totalorder %s31, 0
      %p116 = por %p114, %p115
      %p117 = scmp.ne.s32.totalorder %s103, %s104
      %p118 = scmp.eq.s32.totalorder %s32, 3
      %p119 = por %p117, %p118
      %p121 = scmp.ne.s32.totalorder %s104, %s120
      %p122 = scmp.eq.s32.totalorder %s32, 0
      %p123 = por %p121, %p122
      %s125 = sadd.s32 %s124, 1
      %p128 = scmp.eq.s32.totalorder %s26, 3
      %p129 = scmp.ne.s32.totalorder %s124, %s126
      %p130 = scmp.eq.s32.totalorder %s26, 0
      %p131 = por %p129, %p130
      %p132 = scmp.ne.s32.totalorder %s124, %s126
      %p133 = scmp.eq.s32.totalorder %s31, 3
      %p134 = por %p132, %p133
      %p135 = scmp.ne.s32.totalorder %s126, %s127
      %p136 = scmp.eq.s32.totalorder %s31, 0
      %p137 = por %p135, %p136
      %p138 = scmp.ne.s32.totalorder %s126, %s127
      %p139 = scmp.eq.s32.totalorder %s32, 3
      %p140 = por %p138, %p139
      %p142 = scmp.ne.s32.totalorder %s127, %s141
      %p143 = scmp.eq.s32.totalorder %s32, 0
      %p144 = por %p142, %p143
      %s146 = sadd.s32 %s145, 1
      %p149 = scmp.eq.s32.totalorder %s26, 3
      %p150 = scmp.ne.s32.totalorder %s145, %s147
      %p151 = scmp.eq.s32.totalorder %s26, 0
      %p152 = por %p150, %p151
      %p153 = scmp.ne.s32.totalorder %s145, %s147
      %p154 = scmp.eq.s32.totalorder %s31, 3
      %p155 = por %p153, %p154
      %p156 = scmp.ne.s32.totalorder %s147, %s148
      %p157 = scmp.eq.s32.totalorder %s31, 0
      %p158 = por %p156, %p157
      %p159 = scmp.ne.s32.totalorder %s147, %s148
      %p160 = scmp.eq.s32.totalorder %s32, 3
      %p161 = por %p159, %p160
      %p163 = scmp.ne.s32.totalorder %s148, %s162
      %p164 = scmp.eq.s32.totalorder %s32, 0
      %p165 = por %p163, %p164
      %s166 = ssub.s32 %s34, %s41
      %p167 = scmp.eq.s32.totalorder %s166, 0
      %s169 = sadd.s32 %s168, 1
      %s170 = scalar_select %p167, %s168, %s169
      %p173 = pneg %p167
      %p174 = scmp.eq.s32.totalorder %s26, 3
      %p175 = por %p173, %p174
      %p176 = scmp.ne.s32.totalorder %s168, %s171
      %p177 = scmp.eq.s32.totalorder %s26, 0
      %p178 = por %p176, %p177
      %p179 = scmp.ne.s32.totalorder %s168, %s171
      %p180 = scmp.eq.s32.totalorder %s31, 3
      %p181 = por %p179, %p180
      %p182 = scmp.ne.s32.totalorder %s171, %s172
      %p183 = scmp.eq.s32.totalorder %s31, 0
      %p184 = por %p182, %p183
      %p185 = scmp.ne.s32.totalorder %s171, %s172
      %p186 = scmp.eq.s32.totalorder %s32, 3
      %p187 = por %p185, %p186
      %p189 = scmp.ne.s32.totalorder %s172, %s188
      %p190 = scmp.eq.s32.totalorder %s32, 0
      %p191 = por %p189, %p190
      %s192 = ssub.s32 %s34, %s41
      %p193 = scmp.eq.s32.totalorder %s192, 0
      %s195 = sadd.s32 %s194, 1
      %s196 = scalar_select %p193, %s194, %s195
      %p199 = pneg %p193
      %p200 = scmp.eq.s32.totalorder %s26, 3
      %p201 = por %p199, %p200
      %p202 = scmp.ne.s32.totalorder %s194, %s197
      %p203 = scmp.eq.s32.totalorder %s26, 0
      %p204 = por %p202, %p203
      %p205 = scmp.ne.s32.totalorder %s194, %s197
      %p206 = scmp.eq.s32.totalorder %s31, 3
      %p207 = por %p205, %p206
      %p208 = scmp.ne.s32.totalorder %s197, %s198
      %p209 = scmp.eq.s32.totalorder %s31, 0
      %p210 = por %p208, %p209
      %p211 = scmp.ne.s32.totalorder %s197, %s198
      %p212 = scmp.eq.s32.totalorder %s32, 3
      %p213 = por %p211, %p212
      %p215 = scmp.ne.s32.totalorder %s198, %s214
      %p216 = scmp.eq.s32.totalorder %s32, 0
      %p217 = por %p215, %p216
      %s218 = ssub.s32 %s34, %s41
      %p219 = scmp.eq.s32.totalorder %s218, 0
      %s221 = sadd.s32 %s220, 1
      %s222 = scalar_select %p219, %s220, %s221
      %p225 = pneg %p219
      %p226 = scmp.eq.s32.totalorder %s26, 3
      %p227 = por %p225, %p226
      %p228 = scmp.ne.s32.totalorder %s220, %s223
      %p229 = scmp.eq.s32.totalorder %s26, 0
      %p230 = por %p228, %p229
      %p231 = scmp.ne.s32.totalorder %s220, %s223
      %p232 = scmp.eq.s32.totalorder %s31, 3
      %p233 = por %p231, %p232
      %p234 = scmp.ne.s32.totalorder %s223, %s224
      %p235 = scmp.eq.s32.totalorder %s31, 0
      %p236 = por %p234, %p235
      %p237 = scmp.ne.s32.totalorder %s223, %s224
      %p238 = scmp.eq.s32.totalorder %s32, 3
      %p239 = por %p237, %p238
      %p241 = scmp.ne.s32.totalorder %s224, %s240
      %p242 = scmp.eq.s32.totalorder %s32, 0
      %p243 = por %p241, %p242
      %s244 = ssub.s32 %s34, %s41
      %p245 = scmp.eq.s32.totalorder %s244, 0
      %s247 = sadd.s32 %s246, 1
      %s248 = scalar_select %p245, %s246, %s247
      %p251 = pneg %p245
      %p252 = scmp.eq.s32.totalorder %s26, 3
      %p253 = por %p251, %p252
      %p254 = scmp.ne.s32.totalorder %s246, %s249
      %p255 = scmp.eq.s32.totalorder %s26, 0
      %p256 = por %p254, %p255
      %p257 = scmp.ne.s32.totalorder %s246, %s249
      %p258 = scmp.eq.s32.totalorder %s31, 3
      %p259 = por %p257, %p258
      %p260 = scmp.ne.s32.totalorder %s249, %s250
      %p261 = scmp.eq.s32.totalorder %s31, 0
      %p262 = por %p260, %p261
      %p263 = scmp.ne.s32.totalorder %s249, %s250
      %p264 = scmp.eq.s32.totalorder %s32, 3
      %p265 = por %p263, %p264
      %p267 = scmp.ne.s32.totalorder %s250, %s266
      %p268 = scmp.eq.s32.totalorder %s32, 0
      %p269 = por %p267, %p268
      %s270 = ssub.s32 %s34, %s41
      %p271 = scmp.eq.s32.totalorder %s270, 0
      %s273 = sadd.s32 %s272, 1
      %s274 = scalar_select %p271, %s272, %s273
      %p277 = pneg %p271
      %p278 = scmp.eq.s32.totalorder %s26, 3
      %p279 = por %p277, %p278
      %p280 = scmp.ne.s32.totalorder %s272, %s275
      %p281 = scmp.eq.s32.totalorder %s26, 0
      %p282 = por %p280, %p281
      %p283 = scmp.ne.s32.totalorder %s272, %s275
      %p284 = scmp.eq.s32.totalorder %s31, 3
      %p285 = por %p283, %p284
      %p286 = scmp.ne.s32.totalorder %s275, %s276
      %p287 = scmp.eq.s32.totalorder %s31, 0
      %p288 = por %p286, %p287
      %p289 = scmp.ne.s32.totalorder %s275, %s276
      %p290 = scmp.eq.s32.totalorder %s32, 3
      %p291 = por %p289, %p290
      %p293 = scmp.ne.s32.totalorder %s276, %s292
      %p294 = scmp.eq.s32.totalorder %s32, 0
      %p295 = por %p293, %p294
      %s296 = ssub.s32 %s34, %s41
      %p297 = scmp.eq.s32.totalorder %s296, 0
      %s299 = sadd.s32 %s298, 1
      %s300 = scalar_select %p297, %s298, %s299
      %p303 = pneg %p297
      %p304 = scmp.eq.s32.totalorder %s26, 3
      %p305 = por %p303, %p304
      %p306 = scmp.ne.s32.totalorder %s298, %s301
      %p307 = scmp.eq.s32.totalorder %s26, 0
      %p308 = por %p306, %p307
      %p309 = scmp.ne.s32.totalorder %s298, %s301
      %p310 = scmp.eq.s32.totalorder %s31, 3
      %p311 = por %p309, %p310
      %p312 = scmp.ne.s32.totalorder %s301, %s302
      %p313 = scmp.eq.s32.totalorder %s31, 0
      %p314 = por %p312, %p313
      %p315 = scmp.ne.s32.totalorder %s301, %s302
      %p316 = scmp.eq.s32.totalorder %s32, 3
      %p317 = por %p315, %p316
      %p319 = scmp.ne.s32.totalorder %s302, %s318
      %p320 = scmp.eq.s32.totalorder %s32, 0
      %p321 = por %p319, %p320
      %s322 = ssub.s32 %s34, %s41
      %p323 = scmp.eq.s32.totalorder %s322, 0
      %s325 = sadd.s32 %s324, 1
      %s326 = scalar_select %p323, %s324, %s325
      %p329 = pneg %p323
      %p330 = scmp.eq.s32.totalorder %s26, 3
      %p331 = por %p329, %p330
      %p332 = scmp.ne.s32.totalorder %s324, %s327
      %p333 = scmp.eq.s32.totalorder %s26, 0
      %p334 = por %p332, %p333
      %p335 = scmp.ne.s32.totalorder %s324, %s327
      %p336 = scmp.eq.s32.totalorder %s31, 3
      %p337 = por %p335, %p336
      %p338 = scmp.ne.s32.totalorder %s327, %s328
      %p339 = scmp.eq.s32.totalorder %s31, 0
      %p340 = por %p338, %p339
      %p341 = scmp.ne.s32.totalorder %s327, %s328
      %p342 = scmp.eq.s32.totalorder %s32, 3
      %p343 = por %p341, %p342
      %p345 = scmp.ne.s32.totalorder %s328, %s344
      %p346 = scmp.eq.s32.totalorder %s32, 0
      %p347 = por %p345, %p346
      %s348 = ssub.s32 %s34, %s41
      %p349 = scmp.eq.s32.totalorder %s348, 0
      %s351 = sadd.s32 %s350, 1
      %s352 = scalar_select %p349, %s350, %s351
      %p355 = pneg %p349
      %p356 = scmp.eq.s32.totalorder %s26, 3
      %p357 = por %p355, %p356
      %p358 = scmp.ne.s32.totalorder %s350, %s353
      %p359 = scmp.eq.s32.totalorder %s26, 0
      %p360 = por %p358, %p359
      %p361 = scmp.ne.s32.totalorder %s350, %s353
      %p362 = scmp.eq.s32.totalorder %s31, 3
      %p363 = por %p361, %p362
      %p364 = scmp.ne.s32.totalorder %s353, %s354
      %p365 = scmp.eq.s32.totalorder %s31, 0
      %p366 = por %p364, %p365
      %p367 = scmp.ne.s32.totalorder %s353, %s354
      %p368 = scmp.eq.s32.totalorder %s32, 3
      %p369 = por %p367, %p368
      %p371 = scmp.ne.s32.totalorder %s354, %s370
      %p372 = scmp.eq.s32.totalorder %s32, 0
      %p373 = por %p371, %p372
      %s374 = ssub.s32 %s34, %s41
      %p375 = scmp.eq.s32.totalorder %s374, 0
      %s377 = sadd.s32 %s376, 1
      %s378 = scalar_select %p375, %s376, %s377
      %p381 = pneg %p375
      %p382 = scmp.eq.s32.totalorder %s26, 3
      %p383 = por %p381, %p382
      %p384 = scmp.ne.s32.totalorder %s376, %s379
      %p385 = scmp.eq.s32.totalorder %s26, 0
      %p386 = por %p384, %p385
      %p387 = scmp.ne.s32.totalorder %s376, %s379
      %p388 = scmp.eq.s32.totalorder %s31, 3
      %p389 = por %p387, %p388
      %p390 = scmp.ne.s32.totalorder %s379, %s380
      %p391 = scmp.eq.s32.totalorder %s31, 0
      %p392 = por %p390, %p391
      %p393 = scmp.ne.s32.totalorder %s379, %s380
      %p394 = scmp.eq.s32.totalorder %s32, 3
      %p395 = por %p393, %p394
      %p397 = scmp.ne.s32.totalorder %s380, %s396
      %p398 = scmp.eq.s32.totalorder %s32, 0
      %p399 = por %p397, %p398
      %s400 = ssub.s32 %s34, %s41
      %p401 = scmp.eq.s32.totalorder %s400, 0
      %s403 = sadd.s32 %s402, 1
      %s404 = scalar_select %p401, %s402, %s403
      %p407 = pneg %p401
      %p408 = scmp.eq.s32.totalorder %s26, 3
      %p409 = por %p407, %p408
      %p410 = scmp.ne.s32.totalorder %s402, %s405
      %p411 = scmp.eq.s32.totalorder %s26, 0
      %p412 = por %p410, %p411
      %p413 = scmp.ne.s32.totalorder %s402, %s405
      %p414 = scmp.eq.s32.totalorder %s31, 3
      %p415 = por %p413, %p414
      %p416 = scmp.ne.s32.totalorder %s405, %s406
      %p417 = scmp.eq.s32.totalorder %s31, 0
      %p418 = por %p416, %p417
      %p419 = scmp.ne.s32.totalorder %s405, %s406
      %p420 = scmp.eq.s32.totalorder %s32, 3
      %p421 = por %p419, %p420
      %p423 = scmp.ne.s32.totalorder %s406, %s422
      %p424 = scmp.eq.s32.totalorder %s32, 0
      %p425 = por %p423, %p424
      %s426 = ssub.s32 %s34, %s41
      %p427 = scmp.eq.s32.totalorder %s426, 0
      %s429 = sadd.s32 %s428, 1
      %s430 = scalar_select %p427, %s428, %s429
      %p433 = pneg %p427
      %p434 = scmp.eq.s32.totalorder %s26, 3
      %p435 = por %p433, %p434
      %p436 = scmp.ne.s32.totalorder %s428, %s431
      %p437 = scmp.eq.s32.totalorder %s26, 0
      %p438 = por %p436, %p437
      %p439 = scmp.ne.s32.totalorder %s428, %s431
      %p440 = scmp.eq.s32.totalorder %s31, 3
      %p441 = por %p439, %p440
      %p442 = scmp.ne.s32.totalorder %s431, %s432
      %p443 = scmp.eq.s32.totalorder %s31, 0
      %p444 = por %p442, %p443
      %p445 = scmp.ne.s32.totalorder %s431, %s432
      %p446 = scmp.eq.s32.totalorder %s32, 3
      %p447 = por %p445, %p446
      %p449 = scmp.ne.s32.totalorder %s432, %s448
      %p450 = scmp.eq.s32.totalorder %s32, 0
      %p451 = por %p449, %p450
      %s452 = ssub.s32 %s34, %s41
      %p453 = scmp.eq.s32.totalorder %s452, 0
      %s455 = sadd.s32 %s454, 1
      %s456 = scalar_select %p453, %s454, %s455
      %p459 = pneg %p453
      %p460 = scmp.eq.s32.totalorder %s26, 3
      %p461 = por %p459, %p460
      %p462 = scmp.ne.s32.totalorder %s454, %s457
      %p463 = scmp.eq.s32.totalorder %s26, 0
      %p464 = por %p462, %p463
      %p465 = scmp.ne.s32.totalorder %s454, %s457
      %p466 = scmp.eq.s32.totalorder %s31, 3
      %p467 = por %p465, %p466
      %p468 = scmp.ne.s32.totalorder %s457, %s458
      %p469 = scmp.eq.s32.totalorder %s31, 0
      %p470 = por %p468, %p469
      %p471 = scmp.ne.s32.totalorder %s457, %s458
      %p472 = scmp.eq.s32.totalorder %s32, 3
      %p473 = por %p471, %p472
      %p475 = scmp.ne.s32.totalorder %s458, %s474
      %p476 = scmp.eq.s32.totalorder %s32, 0
      %p477 = por %p475, %p476
      %s478 = ssub.s32 %s33, %s45
      %p479 = scmp.eq.s32.totalorder %s478, 0
      %s481 = sadd.s32 %s480, 1
      %s482 = scalar_select %p479, %s480, %s481
      %p485 = pneg %p479
      %p486 = scmp.eq.s32.totalorder %s26, 3
      %p487 = por %p485, %p486
      %p488 = scmp.ne.s32.totalorder %s480, %s483
      %p489 = scmp.eq.s32.totalorder %s26, 0
      %p490 = por %p488, %p489
      %p491 = scmp.ne.s32.totalorder %s480, %s483
      %p492 = scmp.eq.s32.totalorder %s31, 3
      %p493 = por %p491, %p492
      %p494 = scmp.ne.s32.totalorder %s483, %s484
      %p495 = scmp.eq.s32.totalorder %s31, 0
      %p496 = por %p494, %p495
      %p497 = scmp.ne.s32.totalorder %s483, %s484
      %p498 = scmp.eq.s32.totalorder %s32, 3
      %p499 = por %p497, %p498
      %p501 = scmp.ne.s32.totalorder %s484, %s500
      %p502 = scmp.eq.s32.totalorder %s32, 0
      %p503 = por %p501, %p502
      %p504 = scmp.le.s32.totalorder 1, %s26
      %p505 = scmp.lt.s32.totalorder %s26, 5
      %p506 = pnand %p504, %p505
      %p507 = pneg %p506
      // Predicated region
      $region9: #{tpu_custom_call.1} parent=5 // pred_check
        _
      $region10: #{tpu_custom_call.1} parent=5 // pred_check_branch
        %509 = sbr.rel (%p506) target = $region12
      $region11: #{tpu_custom_call.1} parent=5 // pred_region
        %s510 = ssub.s32 %s26, 1
        // Predicated region
        $region13: #{tpu_custom_call.1} parent=11 // pred_check
          %p511 = pneg %p137
        $region14: #{tpu_custom_call.1} parent=11 // pred_check_branch
          %513 = sbr.rel (%p511) target = $region16
        $region15: #{tpu_custom_call.1} parent=11 // pred_region
          _
        $region16: #{tpu_custom_call.1} parent=11 // pred_fallthru
          _
        // Predicated region
        $region17: #{tpu_custom_call.1} parent=11 // pred_check
          %p514 = pneg %p158
        $region18: #{tpu_custom_call.1} parent=11 // pred_check_branch
          %516 = sbr.rel (%p514) target = $region20
        $region19: #{tpu_custom_call.1} parent=11 // pred_region
          _
        $region20: #{tpu_custom_call.1} parent=11 // pred_fallthru
          _
      $region12: #{tpu_custom_call.1} parent=5 // pred_fallthru
        _
      %p517 = scmp.lt.s32.totalorder %s26, 4
      // Predicated region
      $region21: #{tpu_custom_call.1} parent=5 // pred_check
        %p518 = pneg %p517
      $region22: #{tpu_custom_call.1} parent=5 // pred_check_branch
        %520 = sbr.rel (%p518) target = $region24
      $region23: #{tpu_custom_call.1} parent=5 // pred_region
        // Predicated region
        $region25: #{tpu_custom_call.1} parent=23 // pred_check
          %p521 = pneg %p58
        $region26: #{tpu_custom_call.1} parent=23 // pred_check_branch
          %523 = sbr.rel (%p521) target = $region28
        $region27: #{tpu_custom_call.1} parent=23 // pred_region
          %p524 = scmp.lt.s32.totalorder %s33, 1
          %s525 = scalar_select %p524, %s33, 1
          %s526 = smul.addr %s525, 8
          %s527 = scalar_lea.vmem %s0, %s526
        $region28: #{tpu_custom_call.1} parent=23 // pred_fallthru
          _
        // Predicated region
        $region29: #{tpu_custom_call.1} parent=23 // pred_check
          %p528 = pneg %p84
        $region30: #{tpu_custom_call.1} parent=23 // pred_check_branch
          %530 = sbr.rel (%p528) target = $region32
        $region31: #{tpu_custom_call.1} parent=23 // pred_region
          %p531 = scmp.lt.s32.totalorder %s33, 1
          %s532 = scalar_select %p531, %s33, 1
          %s533 = smul.addr %s532, 8
          %s534 = scalar_lea.vmem %s1, %s533
        $region32: #{tpu_custom_call.1} parent=23 // pred_fallthru
          _
        // Predicated region
        $region33: #{tpu_custom_call.1} parent=23 // pred_check
          %p535 = pneg %p110
        $region34: #{tpu_custom_call.1} parent=23 // pred_check_branch
          %537 = sbr.rel (%p535) target = $region36
        $region35: #{tpu_custom_call.1} parent=23 // pred_region
          %p538 = scmp.lt.s32.totalorder %s33, 1
          %s539 = scalar_select %p538, %s33, 1
          %s540 = scalar_lea.vmem %s2, %s539
        $region36: #{tpu_custom_call.1} parent=23 // pred_fallthru
          _
        // Predicated region
        $region37: #{tpu_custom_call.1} parent=23 // pred_check
          %p541 = pneg %p178
        $region38: #{tpu_custom_call.1} parent=23 // pred_check_branch
          %543 = sbr.rel (%p541) target = $region40
        $region39: #{tpu_custom_call.1} parent=23 // pred_region
          %p544 = scmp.lt.s32.totalorder %s34, 1
          %s545 = scalar_select %p544, %s34, 1
          %s546 = smul.addr %s545, 4
          %s547 = smul.addr %s546, 4
          %s548 = scalar_lea.vmem %s5, %s547
        $region40: #{tpu_custom_call.1} parent=23 // pred_fallthru
          _
        // Predicated region
        $region41: #{tpu_custom_call.1} parent=23 // pred_check
          %p549 = pneg %p204
        $region42: #{tpu_custom_call.1} parent=23 // pred_check_branch
          %551 = sbr.rel (%p549) target = $region44
        $region43: #{tpu_custom_call.1} parent=23 // pred_region
          %p552 = scmp.lt.s32.totalorder %s34, 1
          %s553 = scalar_select %p552, %s34, 1
          %s554 = scalar_lea.vmem %s6, %s553
        $region44: #{tpu_custom_call.1} parent=23 // pred_fallthru
          _
        // Predicated region
        $region45: #{tpu_custom_call.1} parent=23 // pred_check
          %p555 = pneg %p230
        $region46: #{tpu_custom_call.1} parent=23 // pred_check_branch
          %557 = sbr.rel (%p555) target = $region48
        $region47: #{tpu_custom_call.1} parent=23 // pred_region
          %p558 = scmp.lt.s32.totalorder %s34, 1
          %s559 = scalar_select %p558, %s34, 1
          %s560 = smul.addr %s559, 4
          %s561 = smul.addr %s560, 4
          %s562 = scalar_lea.vmem %s7, %s561
        $region48: #{tpu_custom_call.1} parent=23 // pred_fallthru
          _
        // Predicated region
        $region49: #{tpu_custom_call.1} parent=23 // pred_check
          %p563 = pneg %p256
        $region50: #{tpu_custom_call.1} parent=23 // pred_check_branch
          %565 = sbr.rel (%p563) target = $region52
        $region51: #{tpu_custom_call.1} parent=23 // pred_region
          %p566 = scmp.lt.s32.totalorder %s34, 1
          %s567 = scalar_select %p566, %s34, 1
          %s568 = scalar_lea.vmem %s8, %s567
        $region52: #{tpu_custom_call.1} parent=23 // pred_fallthru
          _
        // Predicated region
        $region53: #{tpu_custom_call.1} parent=23 // pred_check
          %p569 = pneg %p282
        $region54: #{tpu_custom_call.1} parent=23 // pred_check_branch
          %571 = sbr.rel (%p569) target = $region56
        $region55: #{tpu_custom_call.1} parent=23 // pred_region
          %p572 = scmp.lt.s32.totalorder %s34, 1
          %s573 = scalar_select %p572, %s34, 1
          %s574 = scalar_lea.vmem %s9, %s573
        $region56: #{tpu_custom_call.1} parent=23 // pred_fallthru
          _
        // Predicated region
        $region57: #{tpu_custom_call.1} parent=23 // pred_check
          %p575 = pneg %p308
        $region58: #{tpu_custom_call.1} parent=23 // pred_check_branch
          %577 = sbr.rel (%p575) target = $region60
        $region59: #{tpu_custom_call.1} parent=23 // pred_region
          %p578 = scmp.lt.s32.totalorder %s34, 1
          %s579 = scalar_select %p578, %s34, 1
          %s580 = scalar_lea.vmem %s10, %s579
        $region60: #{tpu_custom_call.1} parent=23 // pred_fallthru
          _
        // Predicated region
        $region61: #{tpu_custom_call.1} parent=23 // pred_check
          %p581 = pneg %p334
        $region62: #{tpu_custom_call.1} parent=23 // pred_check_branch
          %583 = sbr.rel (%p581) target = $region64
        $region63: #{tpu_custom_call.1} parent=23 // pred_region
          %p584 = scmp.lt.s32.totalorder %s34, 1
          %s585 = scalar_select %p584, %s34, 1
          %s586 = smul.addr %s585, 4
          %s587 = smul.addr %s586, 4
          %s588 = scalar_lea.vmem %s11, %s587
        $region64: #{tpu_custom_call.1} parent=23 // pred_fallthru
          _
        // Predicated region
        $region65: #{tpu_custom_call.1} parent=23 // pred_check
          %p589 = pneg %p360
        $region66: #{tpu_custom_call.1} parent=23 // pred_check_branch
          %591 = sbr.rel (%p589) target = $region68
        $region67: #{tpu_custom_call.1} parent=23 // pred_region
          %p592 = scmp.lt.s32.totalorder %s34, 1
          %s593 = scalar_select %p592, %s34, 1
          %s594 = scalar_lea.vmem %s12, %s593
        $region68: #{tpu_custom_call.1} parent=23 // pred_fallthru
          _
        // Predicated region
        $region69: #{tpu_custom_call.1} parent=23 // pred_check
          %p595 = pneg %p386
        $region70: #{tpu_custom_call.1} parent=23 // pred_check_branch
          %597 = sbr.rel (%p595) target = $region72
        $region71: #{tpu_custom_call.1} parent=23 // pred_region
          %p598 = scmp.lt.s32.totalorder %s34, 1
          %s599 = scalar_select %p598, %s34, 1
          %s600 = smul.addr %s599, 16
          %s601 = smul.addr %s600, 4
          %s602 = scalar_lea.vmem %s13, %s601
        $region72: #{tpu_custom_call.1} parent=23 // pred_fallthru
          _
        // Predicated region
        $region73: #{tpu_custom_call.1} parent=23 // pred_check
          %p603 = pneg %p412
        $region74: #{tpu_custom_call.1} parent=23 // pred_check_branch
          %605 = sbr.rel (%p603) target = $region76
        $region75: #{tpu_custom_call.1} parent=23 // pred_region
          %p606 = scmp.lt.s32.totalorder %s34, 1
          %s607 = scalar_select %p606, %s34, 1
          %s608 = scalar_lea.vmem %s14, %s607
        $region76: #{tpu_custom_call.1} parent=23 // pred_fallthru
          _
        // Predicated region
        $region77: #{tpu_custom_call.1} parent=23 // pred_check
          %p609 = pneg %p438
        $region78: #{tpu_custom_call.1} parent=23 // pred_check_branch
          %611 = sbr.rel (%p609) target = $region80
        $region79: #{tpu_custom_call.1} parent=23 // pred_region
          %p612 = scmp.lt.s32.totalorder %s34, 1
          %s613 = scalar_select %p612, %s34, 1
          %s614 = scalar_lea.vmem %s15, %s613
        $region80: #{tpu_custom_call.1} parent=23 // pred_fallthru
          _
        // Predicated region
        $region81: #{tpu_custom_call.1} parent=23 // pred_check
          %p615 = pneg %p464
        $region82: #{tpu_custom_call.1} parent=23 // pred_check_branch
          %617 = sbr.rel (%p615) target = $region84
        $region83: #{tpu_custom_call.1} parent=23 // pred_region
          %p618 = scmp.lt.s32.totalorder %s34, 1
          %s619 = scalar_select %p618, %s34, 1
          %s620 = scalar_lea.vmem %s16, %s619
        $region84: #{tpu_custom_call.1} parent=23 // pred_fallthru
          _
      $region24: #{tpu_custom_call.1} parent=5 // pred_fallthru
        _
      %p621 = scmp.le.s32.totalorder 1, %s26
      %p622 = scmp.lt.s32.totalorder %s26, 5
      %p623 = pnand %p621, %p622
      %p624 = pneg %p623
      // Predicated region
      $region85: #{tpu_custom_call.1} parent=5 // pred_check
        _
      $region86: #{tpu_custom_call.1} parent=5 // pred_check_branch
        %626 = sbr.rel (%p623) target = $region88
      $region87: #{tpu_custom_call.1} parent=5 // pred_region
        %s627 = ssub.s32 %s26, 1
        %p628 = scmp.lt.s32.totalorder %s35, 1
        %s629 = scalar_select %p628, %s35, 1
        %s630 = smul.addr %s629, 8
        %s631 = scalar_lea.vmem %s0, %s630
        %p632 = pneg %p64
        %p633 = pneg %p61
        %p634 = scmp.lt.s32.totalorder %s35, 1
        %s635 = scalar_select %p634, %s35, 1
        %s636 = smul.addr %s635, 8
        %s637 = scalar_lea.vmem %s1, %s636
        %p638 = pneg %p90
        %p639 = pneg %p87
        %p640 = scmp.lt.s32.totalorder %s35, 1
        %s641 = scalar_select %p640, %s35, 1
        %s642 = scalar_lea.vmem %s2, %s641
        %p643 = pneg %p116
        %p644 = pneg %p113
        %p645 = pneg %p137
        %p646 = pneg %p134
        %p647 = pneg %p158
        %p648 = pneg %p155
        %p649 = scmp.lt.s32.totalorder %s36, 1
        %s650 = scalar_select %p649, %s36, 1
        %s651 = smul.addr %s650, 4
        %s652 = smul.addr %s651, 4
        %s653 = scalar_lea.vmem %s5, %s652
        %p654 = pneg %p184
        %p655 = pneg %p181
        %p656 = scmp.lt.s32.totalorder %s36, 1
        %s657 = scalar_select %p656, %s36, 1
        %s658 = scalar_lea.vmem %s6, %s657
        %p659 = pneg %p210
        %p660 = pneg %p207
        %p661 = scmp.lt.s32.totalorder %s36, 1
        %s662 = scalar_select %p661, %s36, 1
        %s663 = smul.addr %s662, 4
        %s664 = smul.addr %s663, 4
        %s665 = scalar_lea.vmem %s7, %s664
        %p666 = pneg %p236
        %p667 = pneg %p233
        %p668 = scmp.lt.s32.totalorder %s36, 1
        %s669 = scalar_select %p668, %s36, 1
        %s670 = scalar_lea.vmem %s8, %s669
        %p671 = pneg %p262
        %p672 = pneg %p259
        %p673 = scmp.lt.s32.totalorder %s36, 1
        %s674 = scalar_select %p673, %s36, 1
        %s675 = scalar_lea.vmem %s9, %s674
        %p676 = pneg %p288
        %p677 = pneg %p285
        %p678 = scmp.lt.s32.totalorder %s36, 1
        %s679 = scalar_select %p678, %s36, 1
        %s680 = scalar_lea.vmem %s10, %s679
        %p681 = pneg %p314
        %p682 = pneg %p311
        %p683 = scmp.lt.s32.totalorder %s36, 1
        %s684 = scalar_select %p683, %s36, 1
        %s685 = smul.addr %s684, 4
        %s686 = smul.addr %s685, 4
        %s687 = scalar_lea.vmem %s11, %s686
        %p688 = pneg %p340
        %p689 = pneg %p337
        %p690 = scmp.lt.s32.totalorder %s36, 1
        %s691 = scalar_select %p690, %s36, 1
        %s692 = scalar_lea.vmem %s12, %s691
        %p693 = pneg %p366
        %p694 = pneg %p363
        %p695 = scmp.lt.s32.totalorder %s36, 1
        %s696 = scalar_select %p695, %s36, 1
        %s697 = smul.addr %s696, 16
        %s698 = smul.addr %s697, 4
        %s699 = scalar_lea.vmem %s13, %s698
        %p700 = pneg %p392
        %p701 = pneg %p389
        %p702 = scmp.lt.s32.totalorder %s36, 1
        %s703 = scalar_select %p702, %s36, 1
        %s704 = scalar_lea.vmem %s14, %s703
        %p705 = pneg %p418
        %p706 = pneg %p415
        %p707 = scmp.lt.s32.totalorder %s36, 1
        %s708 = scalar_select %p707, %s36, 1
        %s709 = scalar_lea.vmem %s15, %s708
        %p710 = pneg %p444
        %p711 = pneg %p441
        %p712 = scmp.lt.s32.totalorder %s36, 1
        %s713 = scalar_select %p712, %s36, 1
        %s714 = scalar_lea.vmem %s16, %s713
        %p715 = pneg %p470
        %p716 = pneg %p467
        %p717 = pneg %p496
        %p718 = pneg %p493
        %s719 = sand.u32 %s483, 1
        %s720 = scalar_lea.sflag [#allocation4], %s719
        %s721 = sand.u32 %s483, 1
        %s722 = smul.addr %s721, 8
        %s723 = scalar_lea.vmem [#allocation3], %s722
        %p724 = scmp.lt.s32.totalorder %s35, 1
        %s725 = scalar_select %p724, %s35, 1
        %s726 = smul.addr %s725, 8
        %s727 = scalar_lea.vmem %s0, %s726
        %p728 = scmp.lt.s32.totalorder %s35, 1
        %s729 = scalar_select %p728, %s35, 1
        %s730 = smul.addr %s729, 8
        %s731 = scalar_lea.vmem %s1, %s730
        %p732 = scmp.lt.s32.totalorder %s35, 1
        %s733 = scalar_select %p732, %s35, 1
        %s734 = scalar_lea.vmem %s2, %s733
        %p735 = scmp.lt.s32.totalorder %s36, 1
        %s736 = scalar_select %p735, %s36, 1
        %s737 = smul.addr %s736, 4
        %s738 = smul.addr %s737, 4
        %s739 = scalar_lea.vmem %s5, %s738
        %p740 = scmp.lt.s32.totalorder %s36, 1
        %s741 = scalar_select %p740, %s36, 1
        %s742 = scalar_lea.vmem %s6, %s741
        %p743 = scmp.lt.s32.totalorder %s36, 1
        %s744 = scalar_select %p743, %s36, 1
        %s745 = smul.addr %s744, 4
        %s746 = smul.addr %s745, 4
        %s747 = scalar_lea.vmem %s7, %s746
        %p748 = scmp.lt.s32.totalorder %s36, 1
        %s749 = scalar_select %p748, %s36, 1
        %s750 = scalar_lea.vmem %s8, %s749
        %p751 = scmp.lt.s32.totalorder %s36, 1
        %s752 = scalar_select %p751, %s36, 1
        %s753 = scalar_lea.vmem %s9, %s752
        %p754 = scmp.lt.s32.totalorder %s36, 1
        %s755 = scalar_select %p754, %s36, 1
        %s756 = scalar_lea.vmem %s10, %s755
        %p757 = scmp.lt.s32.totalorder %s36, 1
        %s758 = scalar_select %p757, %s36, 1
        %s759 = smul.addr %s758, 4
        %s760 = smul.addr %s759, 4
        %s761 = scalar_lea.vmem %s11, %s760
        %p762 = scmp.lt.s32.totalorder %s36, 1
        %s763 = scalar_select %p762, %s36, 1
        %s764 = scalar_lea.vmem %s12, %s763
        %p765 = scmp.lt.s32.totalorder %s36, 1
        %s766 = scalar_select %p765, %s36, 1
        %s767 = smul.addr %s766, 16
        %s768 = smul.addr %s767, 4
        %s769 = scalar_lea.vmem %s13, %s768
        %p770 = scmp.lt.s32.totalorder %s36, 1
        %s771 = scalar_select %p770, %s36, 1
        %s772 = scalar_lea.vmem %s14, %s771
        %p773 = scmp.lt.s32.totalorder %s36, 1
        %s774 = scalar_select %p773, %s36, 1
        %s775 = scalar_lea.vmem %s15, %s774
        %p776 = scmp.lt.s32.totalorder %s36, 1
        %s777 = scalar_select %p776, %s36, 1
        %s778 = scalar_lea.vmem %s16, %s777
        %p780 = scmp.eq.s32.totalorder %s36, 0
        // Predicated region
        $region89: #{tpu_custom_call.1} parent=87 // pred_check
          %p781 = pneg %p780
        $region90: #{tpu_custom_call.1} parent=87 // pred_check_branch
          %783 = sbr.rel (%p781) target = $region92
        $region91: #{tpu_custom_call.1} parent=87 // pred_region
          %v784 = vld [vmem:[%s727] sm:$0xff]
          %v785 = vpack.c.bf16 %v784, %v784
          %v786 = vld [vmem:[%s3] sm:$0x7]
          %v787 = vld [vmem:[%s4] sm:$0x1]
          %v789 = vlaneseq
          %v790 = vshrl.u32 %v789, 7
          %v791 = vsub.s32 0, %v790
          %v792 = vrot.slane %v787, %v791
          %vm794 = vcmask 48128
          %v796 = vsel %vm794, %v785, 0
          %vm798 = vcmask 1042432
          %v800 = vsel %vm798, %v786, 0
          %802 = vmatprep.subr.bf16.mxu0 0
          %803 = vmatpush1.bf16.msra.mxu0 0
          %804 = vmatprep.subr.bf16.mxu0 0
          %805 = vmatpush1.bf16.msra.mxu0 0
          %806 = vmatprep.subr.bf16.mxu0 0
          %807 = vmatpush1.bf16.msra.mxu0 0
          %808 = vmatprep.subr.bf16.mxu0 0
          %809 = vmatpush1.bf16.msra.mxu0 0
          %810 = vmatprep.subr.bf16.mxu0 0
          %811 = vmatpush1.bf16.msra.mxu0 0
          %812 = vmatprep.subr.bf16.mxu0 0
          %813 = vmatpush1.bf16.msra.mxu0 0
          %814 = vmatprep.subr.bf16.mxu0 0
          %815 = vmatpush1.bf16.msra.mxu0 0
          %816 = vmatprep.subr.bf16.mxu0 0
          %817 = vmatpush1.bf16.msra.mxu0 %v800
          %818 = vmatprep.subr.bf16.mxu0 0
          %819 = vmatpush2.bf16.msra.mxu0 0
          %820 = vmatprep.subr.bf16.mxu0 0
          %821 = vmatpush2.bf16.msra.mxu0 0
          %822 = vmatprep.subr.bf16.mxu0 0
          %823 = vmatpush2.bf16.msra.mxu0 0
          %824 = vmatprep.subr.bf16.mxu0 0
          %825 = vmatpush2.bf16.msra.mxu0 0
          %826 = vmatprep.subr.bf16.mxu0 0
          %827 = vmatpush2.bf16.msra.mxu0 0
          %828 = vmatprep.subr.bf16.mxu0 0
          %829 = vmatpush2.bf16.msra.mxu0 0
          %830 = vmatprep.subr.bf16.mxu0 0
          %831 = vmatpush2.bf16.msra.mxu0 0
          %832 = vmatprep.subr.bf16.mxu0 0
          %833 = vmatpush2.bf16.msra.mxu0 0
          %834 = vmatprep.mubr.bf16.mxu0 0
          %835 = vmatmul.mubr.bf16.gmra.mxu0 %v796
          %v836 = vpop.f32.mrf.mxu0
          %v837 = vadd.f32 %v792, %v836
          %v838 = vpop.f32.mrf.mxu0
          %v839 = vpop.f32.mrf.mxu0
          %v840 = vpop.f32.mrf.mxu0
          %841 = vdwg.mxu0
          %vm842 = vcmask 130048
          %843 = vst.msk [vmem:[%s723] sm:$0xff] %vm842, %v837
          %v844 = vld [vmem:[%s731] sm:$0xff]
          %846 = vrot.lane.b32.xlu0 %v844, 16
          %v847 = vpop.permute.xlu0 %846
          %vm849 = vcmask 261248
          %850 = vst.msk [vmem:[%s723] sm:$0xff] %vm849, %v847
        $region92: #{tpu_custom_call.1} parent=87 // pred_fallthru
          _
        %v851 = vld [vmem:[%s723] sm:$0xff]
        %v852 = vld [vmem:[%s753] sm:$0x1]
        %v853 = vld [vmem:[%s756] sm:$0x1]
        %vm854 = vcmask 261120
        %v855 = vsel %vm854, %v851, 0.0
        %856 = vadd.xlane.f32.xlu0 %v855
        %v857 = vpop.xlane.xlu0 %856
        %v858 = vrcp.pop 32.0
        %v859 = vmul.f32 %v857, %v858
        %v860 = vsub.f32 %v851, %v859
        %v861 = vmul.f32 %v860, %v860
        %v862 = vsel %vm854, %v861, 0.0
        %863 = vadd.xlane.f32.xlu0 %v862
        %v864 = vpop.xlane.xlu0 %863
        %v865 = vmul.f32 %v864, 0.032258064
        %v866 = vrsqrt.pop %v865
        %v867 = vmul.f32 %v865, %v866
        %vm868 = vcmp.eq.f32.partialorder %v865, inf
        %v869 = vsel %vm868, %v865, %v867
        %vm870 = vcmp.eq.f32.partialorder %v865, 0.0
        %v871 = vand.u32 %v865, 2147483648
        %v872 = vsel %vm870, %v871, %v869
        %v873 = vadd.f32 %v872, 1e-06
        %v874 = vrcp.pop %v873
        %v875 = vmul.f32 1.0, %v874
        %v876 = vmul.f32 %v860, %v875
        %v878 = vlaneseq
        %v879 = vshrl.u32 %v878, 7
        %v880 = vsub.s32 0, %v879
        %v881 = vrot.slane %v852, %v880
        %v883 = vmul.f32 %v881, %v876
        %v885 = vlaneseq
        %v886 = vshrl.u32 %v885, 7
        %v887 = vsub.s32 0, %v886
        %v888 = vrot.slane %v853, %v887
        %v890 = vadd.f32 %v883, %v888
        %v891 = vpack.c.bf16 %v890, %v890
        %v892 = vld [vmem:[%s739] sm:$0xf]
        %v893 = vld [vmem:[%s739 + $0x4] sm:$0xf]
        %v894 = vld [vmem:[%s739 + $0x8] sm:$0xf]
        %v895 = vld [vmem:[%s739 + $0xc] sm:$0xf]
        %v896 = vld [vmem:[%s742] sm:$0x1]
        %v898 = vlaneseq
        %v899 = vshrl.u32 %v898, 7
        %v900 = vsub.s32 0, %v899
        %v901 = vrot.slane %v896, %v900
        %v907 = vunpack.c.l.b16 %v892
        %v908 = vunpack.c.l.b16 %v893
        %v909 = vunpack.c.l.b16 %v894
        %v910 = vunpack.c.l.b16 %v895
        %v911 = vpack.c.b16 %v908, %v907
        %v912 = vpack.c.b16 %v910, %v909
        %v916 = vsel %vm854, %v891, 0
        %918 = vmatprep.subr.bf16.mxu0 0
        %919 = vmatpush1.bf16.msra.mxu0 0
        %920 = vmatprep.subr.bf16.mxu0 0
        %921 = vmatpush1.bf16.msra.mxu0 0
        %922 = vmatprep.subr.bf16.mxu0 0
        %923 = vmatpush1.bf16.msra.mxu0 0
        %924 = vmatprep.subr.bf16.mxu0 0
        %925 = vmatpush1.bf16.msra.mxu0 0
        %926 = vmatprep.subr.bf16.mxu0 0
        %927 = vmatpush1.bf16.msra.mxu0 0
        %928 = vmatprep.subr.bf16.mxu0 0
        %929 = vmatpush1.bf16.msra.mxu0 0
        %930 = vmatprep.subr.bf16.mxu0 0
        %931 = vmatpush1.bf16.msra.mxu0 %v912
        %932 = vmatprep.subr.bf16.mxu0 0
        %933 = vmatpush1.bf16.msra.mxu0 %v911
        %934 = vmatprep.subr.bf16.mxu0 0
        %935 = vmatpush2.bf16.msra.mxu0 0
        %936 = vmatprep.subr.bf16.mxu0 0
        %937 = vmatpush2.bf16.msra.mxu0 0
        %938 = vmatprep.subr.bf16.mxu0 0
        %939 = vmatpush2.bf16.msra.mxu0 0
        %940 = vmatprep.subr.bf16.mxu0 0
        %941 = vmatpush2.bf16.msra.mxu0 0
        %942 = vmatprep.subr.bf16.mxu0 0
        %943 = vmatpush2.bf16.msra.mxu0 0
        %944 = vmatprep.subr.bf16.mxu0 0
        %945 = vmatpush2.bf16.msra.mxu0 0
        %946 = vmatprep.subr.bf16.mxu0 0
        %947 = vmatpush2.bf16.msra.mxu0 0
        %948 = vmatprep.subr.bf16.mxu0 0
        %949 = vmatpush2.bf16.msra.mxu0 0
        %950 = vmatprep.mubr.bf16.mxu0 0
        %951 = vmatmul.mubr.bf16.gmra.mxu0 %v916
        %v952 = vpop.f32.mrf.mxu0
        %v953 = vadd.f32 %v901, %v952
        %v954 = vpop.f32.mrf.mxu0
        %v955 = vpop.f32.mrf.mxu0
        %v956 = vpop.f32.mrf.mxu0
        %957 = vdwg.mxu0
        %v958 = vld [vmem:[%s734] sm:$0x1]
        %vm959 = vcmp.gt.s32.totalorder %v958, 0
        %v960 = vmul.f32 %v953, 0.35355338
        %v961 = vpack.c.bf16 %v960, %v960
        %v962 = vpack.c.bf16 %v953, %v953
        %964 = vrot.lane.b32.xlu0 %v962, 96
        %v965 = vpop.permute.xlu0 %964
        %vm966 = vcmask 64512
        %v968 = vsel %vm966, %v961, 0
        %v971 = vsel %vm966, %v965, 0
        %973 = vmatprep.subr.bf16.mxu0 0
        %974 = vmatpush1.bf16.xpose.msra.mxu0 0
        %975 = vmatprep.subr.bf16.mxu0 0
        %976 = vmatpush1.bf16.xpose.msra.mxu0 0
        %977 = vmatprep.subr.bf16.mxu0 0
        %978 = vmatpush1.bf16.xpose.msra.mxu0 0
        %979 = vmatprep.subr.bf16.mxu0 0
        %980 = vmatpush1.bf16.xpose.msra.mxu0 0
        %981 = vmatprep.subr.bf16.mxu0 0
        %982 = vmatpush1.bf16.xpose.msra.mxu0 0
        %983 = vmatprep.subr.bf16.mxu0 0
        %984 = vmatpush1.bf16.xpose.msra.mxu0 0
        %985 = vmatprep.subr.bf16.mxu0 0
        %986 = vmatpush1.bf16.xpose.msra.mxu0 0
        %987 = vmatprep.subr.bf16.mxu0 0
        %988 = vmatpush1.bf16.xpose.msra.mxu0 %v971
        %989 = vmatprep.subr.bf16.mxu0 0
        %990 = vmatpush2.bf16.xpose.msra.mxu0 0
        %991 = vmatprep.subr.bf16.mxu0 0
        %992 = vmatpush2.bf16.xpose.msra.mxu0 0
        %993 = vmatprep.subr.bf16.mxu0 0
        %994 = vmatpush2.bf16.xpose.msra.mxu0 0
        %995 = vmatprep.subr.bf16.mxu0 0
        %996 = vmatpush2.bf16.xpose.msra.mxu0 0
        %997 = vmatprep.subr.bf16.mxu0 0
        %998 = vmatpush2.bf16.xpose.msra.mxu0 0
        %999 = vmatprep.subr.bf16.mxu0 0
        %1000 = vmatpush2.bf16.xpose.msra.mxu0 0
        %1001 = vmatprep.subr.bf16.mxu0 0
        %1002 = vmatpush2.bf16.xpose.msra.mxu0 0
        %1003 = vmatprep.subr.bf16.mxu0 0
        %1004 = vmatpush2.bf16.xpose.msra.mxu0 0
        %1005 = vmatprep.mubr.bf16.mxu0 0
        %1006 = vmatmul.mubr.bf16.gmra.mxu0 %v968
        %v1007 = vpop.f32.mrf.mxu0
        %v1008 = vadd.f32 0.0, %v1007
        %v1009 = vpop.f32.mrf.mxu0
        %v1010 = vpop.f32.mrf.mxu0
        %v1011 = vpop.f32.mrf.mxu0
        %1012 = vdwg.mxu0
        %v1013 = vsel %vm959, 1, 0
        %v1014 = vlaneseq
        %v1015 = vshrl.u32 %v1014, 7
        %v1016 = vsub.s32 0, %v1015
        %v1017 = vrot.slane %v1013, %v1016
        %vm1018 = vcmp.eq.s32.totalorder %v1017, 1
        %v1019 = vsel %vm1018, %v1008, -1e+09
        %v1020 = vsel %vm966, %v1019, -inf
        %1021 = vmax.xlane.f32.xlu0 %v1020
        %v1022 = vpop.xlane.xlu0 %1021
        %v1023 = vsub.f32 %v1019, %v1022
        %v1024 = vmul.f32 %v1023, 1.442695
        %v1025 = vpow.pop %v1024
        %v1026 = vsel %vm966, %v1025, 0.0
        %1027 = vadd.xlane.f32.xlu0 %v1026
        %v1028 = vpop.xlane.xlu0 %1027
        %v1029 = vrcp.pop %v1028
        %v1030 = vmul.f32 %v1025, %v1029
        %v1031 = vpack.c.bf16 %v1030, %v1030
        %1032 = vrot.lane.b32.xlu0 %v962, 64
        %v1033 = vpop.permute.xlu0 %1032
        %v1035 = vsel %vm966, %v1031, 0
        %vm1037 = vcmask 1043456
        %v1039 = vsel %vm1037, %v1033, 0
        %1041 = vmatprep.subr.bf16.mxu0 0
        %1042 = vmatpush1.bf16.msra.mxu0 0
        %1043 = vmatprep.subr.bf16.mxu0 0
        %1044 = vmatpush1.bf16.msra.mxu0 0
        %1045 = vmatprep.subr.bf16.mxu0 0
        %1046 = vmatpush1.bf16.msra.mxu0 0
        %1047 = vmatprep.subr.bf16.mxu0 0
        %1048 = vmatpush1.bf16.msra.mxu0 0
        %1049 = vmatprep.subr.bf16.mxu0 0
        %1050 = vmatpush1.bf16.msra.mxu0 0
        %1051 = vmatprep.subr.bf16.mxu0 0
        %1052 = vmatpush1.bf16.msra.mxu0 0
        %1053 = vmatprep.subr.bf16.mxu0 0
        %1054 = vmatpush1.bf16.msra.mxu0 0
        %1055 = vmatprep.subr.bf16.mxu0 0
        %1056 = vmatpush1.bf16.msra.mxu0 %v1039
        %1057 = vmatprep.subr.bf16.mxu0 0
        %1058 = vmatpush2.bf16.msra.mxu0 0
        %1059 = vmatprep.subr.bf16.mxu0 0
        %1060 = vmatpush2.bf16.msra.mxu0 0
        %1061 = vmatprep.subr.bf16.mxu0 0
        %1062 = vmatpush2.bf16.msra.mxu0 0
        %1063 = vmatprep.subr.bf16.mxu0 0
        %1064 = vmatpush2.bf16.msra.mxu0 0
        %1065 = vmatprep.subr.bf16.mxu0 0
        %1066 = vmatpush2.bf16.msra.mxu0 0
        %1067 = vmatprep.subr.bf16.mxu0 0
        %1068 = vmatpush2.bf16.msra.mxu0 0
        %1069 = vmatprep.subr.bf16.mxu0 0
        %1070 = vmatpush2.bf16.msra.mxu0 0
        %1071 = vmatprep.subr.bf16.mxu0 0
        %1072 = vmatpush2.bf16.msra.mxu0 0
        %1073 = vmatprep.mubr.bf16.mxu0 0
        %1074 = vmatmul.mubr.bf16.gmra.mxu0 %v1035
        %v1075 = vpop.f32.mrf.mxu0
        %v1076 = vadd.f32 0.0, %v1075
        %v1077 = vpop.f32.mrf.mxu0
        %v1078 = vpop.f32.mrf.mxu0
        %v1079 = vpop.f32.mrf.mxu0
        %1080 = vdwg.mxu0
        %v1081 = vpack.c.bf16 %v1076, %v1076
        %vm1082 = vcmask 60416
        %1083 = vst.msk [vmem:[#allocation2] sm:$0xf] %vm1082, %v1081
        %1085 = vrot.lane.b32.xlu0 %v961, 120
        %v1086 = vpop.permute.xlu0 %1085
        %1087 = vrot.lane.b32.xlu0 %v962, 88
        %v1088 = vpop.permute.xlu0 %1087
        %v1090 = vsel %vm966, %v1086, 0
        %v1093 = vsel %vm966, %v1088, 0
        %1095 = vmatprep.subr.bf16.mxu0 0
        %1096 = vmatpush1.bf16.xpose.msra.mxu0 0
        %1097 = vmatprep.subr.bf16.mxu0 0
        %1098 = vmatpush1.bf16.xpose.msra.mxu0 0
        %1099 = vmatprep.subr.bf16.mxu0 0
        %1100 = vmatpush1.bf16.xpose.msra.mxu0 0
        %1101 = vmatprep.subr.bf16.mxu0 0
        %1102 = vmatpush1.bf16.xpose.msra.mxu0 0
        %1103 = vmatprep.subr.bf16.mxu0 0
        %1104 = vmatpush1.bf16.xpose.msra.mxu0 0
        %1105 = vmatprep.subr.bf16.mxu0 0
        %1106 = vmatpush1.bf16.xpose.msra.mxu0 0
        %1107 = vmatprep.subr.bf16.mxu0 0
        %1108 = vmatpush1.bf16.xpose.msra.mxu0 0
        %1109 = vmatprep.subr.bf16.mxu0 0
        %1110 = vmatpush1.bf16.xpose.msra.mxu0 %v1093
        %1111 = vmatprep.subr.bf16.mxu0 0
        %1112 = vmatpush2.bf16.xpose.msra.mxu0 0
        %1113 = vmatprep.subr.bf16.mxu0 0
        %1114 = vmatpush2.bf16.xpose.msra.mxu0 0
        %1115 = vmatprep.subr.bf16.mxu0 0
        %1116 = vmatpush2.bf16.xpose.msra.mxu0 0
        %1117 = vmatprep.subr.bf16.mxu0 0
        %1118 = vmatpush2.bf16.xpose.msra.mxu0 0
        %1119 = vmatprep.subr.bf16.mxu0 0
        %1120 = vmatpush2.bf16.xpose.msra.mxu0 0
        %1121 = vmatprep.subr.bf16.mxu0 0
        %1122 = vmatpush2.bf16.xpose.msra.mxu0 0
        %1123 = vmatprep.subr.bf16.mxu0 0
        %1124 = vmatpush2.bf16.xpose.msra.mxu0 0
        %1125 = vmatprep.subr.bf16.mxu0 0
        %1126 = vmatpush2.bf16.xpose.msra.mxu0 0
        %1127 = vmatprep.mubr.bf16.mxu0 0
        %1128 = vmatmul.mubr.bf16.gmra.mxu0 %v1090
        %v1129 = vpop.f32.mrf.mxu0
        %v1130 = vadd.f32 0.0, %v1129
        %v1131 = vpop.f32.mrf.mxu0
        %v1132 = vpop.f32.mrf.mxu0
        %v1133 = vpop.f32.mrf.mxu0
        %1134 = vdwg.mxu0
        %v1135 = vsel %vm1018, %v1130, -1e+09
        %v1136 = vsel %vm966, %v1135, -inf
        %1137 = vmax.xlane.f32.xlu0 %v1136
        %v1138 = vpop.xlane.xlu0 %1137
        %v1139 = vsub.f32 %v1135, %v1138
        %v1140 = vmul.f32 %v1139, 1.442695
        %v1141 = vpow.pop %v1140
        %v1142 = vsel %vm966, %v1141, 0.0
        %1143 = vadd.xlane.f32.xlu0 %v1142
        %v1144 = vpop.xlane.xlu0 %1143
        %v1145 = vrcp.pop %v1144
        %v1146 = vmul.f32 %v1141, %v1145
        %v1147 = vpack.c.bf16 %v1146, %v1146
        %1148 = vrot.lane.b32.xlu0 %v962, 56
        %v1149 = vpop.permute.xlu0 %1148
        %v1151 = vsel %vm966, %v1147, 0
        %v1154 = vsel %vm1037, %v1149, 0
        %1156 = vmatprep.subr.bf16.mxu0 0
        %1157 = vmatpush1.bf16.msra.mxu0 0
        %1158 = vmatprep.subr.bf16.mxu0 0
        %1159 = vmatpush1.bf16.msra.mxu0 0
        %1160 = vmatprep.subr.bf16.mxu0 0
        %1161 = vmatpush1.bf16.msra.mxu0 0
        %1162 = vmatprep.subr.bf16.mxu0 0
        %1163 = vmatpush1.bf16.msra.mxu0 0
        %1164 = vmatprep.subr.bf16.mxu0 0
        %1165 = vmatpush1.bf16.msra.mxu0 0
        %1166 = vmatprep.subr.bf16.mxu0 0
        %1167 = vmatpush1.bf16.msra.mxu0 0
        %1168 = vmatprep.subr.bf16.mxu0 0
        %1169 = vmatpush1.bf16.msra.mxu0 0
        %1170 = vmatprep.subr.bf16.mxu0 0
        %1171 = vmatpush1.bf16.msra.mxu0 %v1154
        %1172 = vmatprep.subr.bf16.mxu0 0
        %1173 = vmatpush2.bf16.msra.mxu0 0
        %1174 = vmatprep.subr.bf16.mxu0 0
        %1175 = vmatpush2.bf16.msra.mxu0 0
        %1176 = vmatprep.subr.bf16.mxu0 0
        %1177 = vmatpush2.bf16.msra.mxu0 0
        %1178 = vmatprep.subr.bf16.mxu0 0
        %1179 = vmatpush2.bf16.msra.mxu0 0
        %1180 = vmatprep.subr.bf16.mxu0 0
        %1181 = vmatpush2.bf16.msra.mxu0 0
        %1182 = vmatprep.subr.bf16.mxu0 0
        %1183 = vmatpush2.bf16.msra.mxu0 0
        %1184 = vmatprep.subr.bf16.mxu0 0
        %1185 = vmatpush2.bf16.msra.mxu0 0
        %1186 = vmatprep.subr.bf16.mxu0 0
        %1187 = vmatpush2.bf16.msra.mxu0 0
        %1188 = vmatprep.mubr.bf16.mxu0 0
        %1189 = vmatmul.mubr.bf16.gmra.mxu0 %v1151
        %v1190 = vpop.f32.mrf.mxu0
        %v1191 = vadd.f32 0.0, %v1190
        %v1192 = vpop.f32.mrf.mxu0
        %v1193 = vpop.f32.mrf.mxu0
        %v1194 = vpop.f32.mrf.mxu0
        %1195 = vdwg.mxu0
        %v1196 = vpack.c.bf16 %v1191, %v1191
        %v1198 = vunpack.c.l.b16 %v1196
        %v1199 = vpack.c.b16 %v1198, %v1198
        %1200 = vrot.lane.b32.xlu0 %v1199, 8
        %v1201 = vpop.permute.xlu0 %1200
        %vm1203 = vcmask 126016
        %1204 = vst.msk [vmem:[#allocation2] sm:$0xf] %vm1203, %v1201
        %1205 = vrot.lane.b32.xlu0 %v961, 112
        %v1206 = vpop.permute.xlu0 %1205
        %1207 = vrot.lane.b32.xlu0 %v962, 80
        %v1208 = vpop.permute.xlu0 %1207
        %v1210 = vsel %vm966, %v1206, 0
        %v1213 = vsel %vm966, %v1208, 0
        %1215 = vmatprep.subr.bf16.mxu0 0
        %1216 = vmatpush1.bf16.xpose.msra.mxu0 0
        %1217 = vmatprep.subr.bf16.mxu0 0
        %1218 = vmatpush1.bf16.xpose.msra.mxu0 0
        %1219 = vmatprep.subr.bf16.mxu0 0
        %1220 = vmatpush1.bf16.xpose.msra.mxu0 0
        %1221 = vmatprep.subr.bf16.mxu0 0
        %1222 = vmatpush1.bf16.xpose.msra.mxu0 0
        %1223 = vmatprep.subr.bf16.mxu0 0
        %1224 = vmatpush1.bf16.xpose.msra.mxu0 0
        %1225 = vmatprep.subr.bf16.mxu0 0
        %1226 = vmatpush1.bf16.xpose.msra.mxu0 0
        %1227 = vmatprep.subr.bf16.mxu0 0
        %1228 = vmatpush1.bf16.xpose.msra.mxu0 0
        %1229 = vmatprep.subr.bf16.mxu0 0
        %1230 = vmatpush1.bf16.xpose.msra.mxu0 %v1213
        %1231 = vmatprep.subr.bf16.mxu0 0
        %1232 = vmatpush2.bf16.xpose.msra.mxu0 0
        %1233 = vmatprep.subr.bf16.mxu0 0
        %1234 = vmatpush2.bf16.xpose.msra.mxu0 0
        %1235 = vmatprep.subr.bf16.mxu0 0
        %1236 = vmatpush2.bf16.xpose.msra.mxu0 0
        %1237 = vmatprep.subr.bf16.mxu0 0
        %1238 = vmatpush2.bf16.xpose.msra.mxu0 0
        %1239 = vmatprep.subr.bf16.mxu0 0
        %1240 = vmatpush2.bf16.xpose.msra.mxu0 0
        %1241 = vmatprep.subr.bf16.mxu0 0
        %1242 = vmatpush2.bf16.xpose.msra.mxu0 0
        %1243 = vmatprep.subr.bf16.mxu0 0
        %1244 = vmatpush2.bf16.xpose.msra.mxu0 0
        %1245 = vmatprep.subr.bf16.mxu0 0
        %1246 = vmatpush2.bf16.xpose.msra.mxu0 0
        %1247 = vmatprep.mubr.bf16.mxu0 0
        %1248 = vmatmul.mubr.bf16.gmra.mxu0 %v1210
        %v1249 = vpop.f32.mrf.mxu0
        %v1250 = vadd.f32 0.0, %v1249
        %v1251 = vpop.f32.mrf.mxu0
        %v1252 = vpop.f32.mrf.mxu0
        %v1253 = vpop.f32.mrf.mxu0
        %1254 = vdwg.mxu0
        %v1255 = vsel %vm1018, %v1250, -1e+09
        %v1256 = vsel %vm966, %v1255, -inf
        %1257 = vmax.xlane.f32.xlu0 %v1256
        %v1258 = vpop.xlane.xlu0 %1257
        %v1259 = vsub.f32 %v1255, %v1258
        %v1260 = vmul.f32 %v1259, 1.442695
        %v1261 = vpow.pop %v1260
        %v1262 = vsel %vm966, %v1261, 0.0
        %1263 = vadd.xlane.f32.xlu0 %v1262
        %v1264 = vpop.xlane.xlu0 %1263
        %v1265 = vrcp.pop %v1264
        %v1266 = vmul.f32 %v1261, %v1265
        %v1267 = vpack.c.bf16 %v1266, %v1266
        %1268 = vrot.lane.b32.xlu0 %v962, 48
        %v1269 = vpop.permute.xlu0 %1268
        %v1271 = vsel %vm966, %v1267, 0
        %v1274 = vsel %vm1037, %v1269, 0
        %1276 = vmatprep.subr.bf16.mxu0 0
        %1277 = vmatpush1.bf16.msra.mxu0 0
        %1278 = vmatprep.subr.bf16.mxu0 0
        %1279 = vmatpush1.bf16.msra.mxu0 0
        %1280 = vmatprep.subr.bf16.mxu0 0
        %1281 = vmatpush1.bf16.msra.mxu0 0
        %1282 = vmatprep.subr.bf16.mxu0 0
        %1283 = vmatpush1.bf16.msra.mxu0 0
        %1284 = vmatprep.subr.bf16.mxu0 0
        %1285 = vmatpush1.bf16.msra.mxu0 0
        %1286 = vmatprep.subr.bf16.mxu0 0
        %1287 = vmatpush1.bf16.msra.mxu0 0
        %1288 = vmatprep.subr.bf16.mxu0 0
        %1289 = vmatpush1.bf16.msra.mxu0 0
        %1290 = vmatprep.subr.bf16.mxu0 0
        %1291 = vmatpush1.bf16.msra.mxu0 %v1274
        %1292 = vmatprep.subr.bf16.mxu0 0
        %1293 = vmatpush2.bf16.msra.mxu0 0
        %1294 = vmatprep.subr.bf16.mxu0 0
        %1295 = vmatpush2.bf16.msra.mxu0 0
        %1296 = vmatprep.subr.bf16.mxu0 0
        %1297 = vmatpush2.bf16.msra.mxu0 0
        %1298 = vmatprep.subr.bf16.mxu0 0
        %1299 = vmatpush2.bf16.msra.mxu0 0
        %1300 = vmatprep.subr.bf16.mxu0 0
        %1301 = vmatpush2.bf16.msra.mxu0 0
        %1302 = vmatprep.subr.bf16.mxu0 0
        %1303 = vmatpush2.bf16.msra.mxu0 0
        %1304 = vmatprep.subr.bf16.mxu0 0
        %1305 = vmatpush2.bf16.msra.mxu0 0
        %1306 = vmatprep.subr.bf16.mxu0 0
        %1307 = vmatpush2.bf16.msra.mxu0 0
        %1308 = vmatprep.mubr.bf16.mxu0 0
        %1309 = vmatmul.mubr.bf16.gmra.mxu0 %v1271
        %v1310 = vpop.f32.mrf.mxu0
        %v1311 = vadd.f32 0.0, %v1310
        %v1312 = vpop.f32.mrf.mxu0
        %v1313 = vpop.f32.mrf.mxu0
        %v1314 = vpop.f32.mrf.mxu0
        %1315 = vdwg.mxu0
        %v1316 = vpack.c.bf16 %v1311, %v1311
        %v1318 = vunpack.c.l.b16 %v1316
        %v1319 = vpack.c.b16 %v1318, %v1318
        %1320 = vrot.lane.b32.xlu0 %v1319, 16
        %v1321 = vpop.permute.xlu0 %1320
        %vm1323 = vcmask 191616
        %1324 = vst.msk [vmem:[#allocation2] sm:$0xf] %vm1323, %v1321
        %1325 = vrot.lane.b32.xlu0 %v961, 104
        %v1326 = vpop.permute.xlu0 %1325
        %1327 = vrot.lane.b32.xlu0 %v962, 72
        %v1328 = vpop.permute.xlu0 %1327
        %v1330 = vsel %vm966, %v1326, 0
        %v1333 = vsel %vm966, %v1328, 0
        %1335 = vmatprep.subr.bf16.mxu0 0
        %1336 = vmatpush1.bf16.xpose.msra.mxu0 0
        %1337 = vmatprep.subr.bf16.mxu0 0
        %1338 = vmatpush1.bf16.xpose.msra.mxu0 0
        %1339 = vmatprep.subr.bf16.mxu0 0
        %1340 = vmatpush1.bf16.xpose.msra.mxu0 0
        %1341 = vmatprep.subr.bf16.mxu0 0
        %1342 = vmatpush1.bf16.xpose.msra.mxu0 0
        %1343 = vmatprep.subr.bf16.mxu0 0
        %1344 = vmatpush1.bf16.xpose.msra.mxu0 0
        %1345 = vmatprep.subr.bf16.mxu0 0
        %1346 = vmatpush1.bf16.xpose.msra.mxu0 0
        %1347 = vmatprep.subr.bf16.mxu0 0
        %1348 = vmatpush1.bf16.xpose.msra.mxu0 0
        %1349 = vmatprep.subr.bf16.mxu0 0
        %1350 = vmatpush1.bf16.xpose.msra.mxu0 %v1333
        %1351 = vmatprep.subr.bf16.mxu0 0
        %1352 = vmatpush2.bf16.xpose.msra.mxu0 0
        %1353 = vmatprep.subr.bf16.mxu0 0
        %1354 = vmatpush2.bf16.xpose.msra.mxu0 0
        %1355 = vmatprep.subr.bf16.mxu0 0
        %1356 = vmatpush2.bf16.xpose.msra.mxu0 0
        %1357 = vmatprep.subr.bf16.mxu0 0
        %1358 = vmatpush2.bf16.xpose.msra.mxu0 0
        %1359 = vmatprep.subr.bf16.mxu0 0
        %1360 = vmatpush2.bf16.xpose.msra.mxu0 0
        %1361 = vmatprep.subr.bf16.mxu0 0
        %1362 = vmatpush2.bf16.xpose.msra.mxu0 0
        %1363 = vmatprep.subr.bf16.mxu0 0
        %1364 = vmatpush2.bf16.xpose.msra.mxu0 0
        %1365 = vmatprep.subr.bf16.mxu0 0
        %1366 = vmatpush2.bf16.xpose.msra.mxu0 0
        %1367 = vmatprep.mubr.bf16.mxu0 0
        %1368 = vmatmul.mubr.bf16.gmra.mxu0 %v1330
        %v1369 = vpop.f32.mrf.mxu0
        %v1370 = vadd.f32 0.0, %v1369
        %v1371 = vpop.f32.mrf.mxu0
        %v1372 = vpop.f32.mrf.mxu0
        %v1373 = vpop.f32.mrf.mxu0
        %1374 = vdwg.mxu0
        %v1375 = vsel %vm1018, %v1370, -1e+09
        %v1376 = vsel %vm966, %v1375, -inf
        %1377 = vmax.xlane.f32.xlu0 %v1376
        %v1378 = vpop.xlane.xlu0 %1377
        %v1379 = vsub.f32 %v1375, %v1378
        %v1380 = vmul.f32 %v1379, 1.442695
        %v1381 = vpow.pop %v1380
        %v1382 = vsel %vm966, %v1381, 0.0
        %1383 = vadd.xlane.f32.xlu0 %v1382
        %v1384 = vpop.xlane.xlu0 %1383
        %v1385 = vrcp.pop %v1384
        %v1386 = vmul.f32 %v1381, %v1385
        %v1387 = vpack.c.bf16 %v1386, %v1386
        %1388 = vrot.lane.b32.xlu0 %v962, 40
        %v1389 = vpop.permute.xlu0 %1388
        %v1391 = vsel %vm966, %v1387, 0
        %v1394 = vsel %vm1037, %v1389, 0
        %1396 = vmatprep.subr.bf16.mxu0 0
        %1397 = vmatpush1.bf16.msra.mxu0 0
        %1398 = vmatprep.subr.bf16.mxu0 0
        %1399 = vmatpush1.bf16.msra.mxu0 0
        %1400 = vmatprep.subr.bf16.mxu0 0
        %1401 = vmatpush1.bf16.msra.mxu0 0
        %1402 = vmatprep.subr.bf16.mxu0 0
        %1403 = vmatpush1.bf16.msra.mxu0 0
        %1404 = vmatprep.subr.bf16.mxu0 0
        %1405 = vmatpush1.bf16.msra.mxu0 0
        %1406 = vmatprep.subr.bf16.mxu0 0
        %1407 = vmatpush1.bf16.msra.mxu0 0
        %1408 = vmatprep.subr.bf16.mxu0 0
        %1409 = vmatpush1.bf16.msra.mxu0 0
        %1410 = vmatprep.subr.bf16.mxu0 0
        %1411 = vmatpush1.bf16.msra.mxu0 %v1394
        %1412 = vmatprep.subr.bf16.mxu0 0
        %1413 = vmatpush2.bf16.msra.mxu0 0
        %1414 = vmatprep.subr.bf16.mxu0 0
        %1415 = vmatpush2.bf16.msra.mxu0 0
        %1416 = vmatprep.subr.bf16.mxu0 0
        %1417 = vmatpush2.bf16.msra.mxu0 0
        %1418 = vmatprep.subr.bf16.mxu0 0
        %1419 = vmatpush2.bf16.msra.mxu0 0
        %1420 = vmatprep.subr.bf16.mxu0 0
        %1421 = vmatpush2.bf16.msra.mxu0 0
        %1422 = vmatprep.subr.bf16.mxu0 0
        %1423 = vmatpush2.bf16.msra.mxu0 0
        %1424 = vmatprep.subr.bf16.mxu0 0
        %1425 = vmatpush2.bf16.msra.mxu0 0
        %1426 = vmatprep.subr.bf16.mxu0 0
        %1427 = vmatpush2.bf16.msra.mxu0 0
        %1428 = vmatprep.mubr.bf16.mxu0 0
        %1429 = vmatmul.mubr.bf16.gmra.mxu0 %v1391
        %v1430 = vpop.f32.mrf.mxu0
        %v1431 = vadd.f32 0.0, %v1430
        %v1432 = vpop.f32.mrf.mxu0
        %v1433 = vpop.f32.mrf.mxu0
        %v1434 = vpop.f32.mrf.mxu0
        %1435 = vdwg.mxu0
        %v1436 = vpack.c.bf16 %v1431, %v1431
        %v1438 = vunpack.c.l.b16 %v1436
        %v1439 = vpack.c.b16 %v1438, %v1438
        %1440 = vrot.lane.b32.xlu0 %v1439, 24
        %v1441 = vpop.permute.xlu0 %1440
        %vm1443 = vcmask 257216
        %1444 = vst.msk [vmem:[#allocation2] sm:$0xf] %vm1443, %v1441
        %v1445 = vld [vmem:[#allocation2] sm:$0xf]
        %v1446 = vld [vmem:[%s747] sm:$0xf]
        %v1447 = vld [vmem:[%s747 + $0x4] sm:$0xf]
        %v1448 = vld [vmem:[%s747 + $0x8] sm:$0xf]
        %v1449 = vld [vmem:[%s747 + $0xc] sm:$0xf]
        %v1450 = vld [vmem:[%s750] sm:$0x1]
        %v1452 = vlaneseq
        %v1453 = vshrl.u32 %v1452, 7
        %v1454 = vsub.s32 0, %v1453
        %v1455 = vrot.slane %v1450, %v1454
        %v1461 = vunpack.c.l.b16 %v1446
        %v1462 = vunpack.c.l.b16 %v1447
        %v1463 = vunpack.c.l.b16 %v1448
        %v1464 = vunpack.c.l.b16 %v1449
        %v1465 = vpack.c.b16 %v1462, %v1461
        %v1466 = vpack.c.b16 %v1464, %v1463
        %v1470 = vsel %vm854, %v1445, 0
        %1472 = vmatprep.subr.bf16.mxu0 0
        %1473 = vmatpush1.bf16.msra.mxu0 0
        %1474 = vmatprep.subr.bf16.mxu0 0
        %1475 = vmatpush1.bf16.msra.mxu0 0
        %1476 = vmatprep.subr.bf16.mxu0 0
        %1477 = vmatpush1.bf16.msra.mxu0 0
        %1478 = vmatprep.subr.bf16.mxu0 0
        %1479 = vmatpush1.bf16.msra.mxu0 0
        %1480 = vmatprep.subr.bf16.mxu0 0
        %1481 = vmatpush1.bf16.msra.mxu0 0
        %1482 = vmatprep.subr.bf16.mxu0 0
        %1483 = vmatpush1.bf16.msra.mxu0 0
        %1484 = vmatprep.subr.bf16.mxu0 0
        %1485 = vmatpush1.bf16.msra.mxu0 %v1466
        %1486 = vmatprep.subr.bf16.mxu0 0
        %1487 = vmatpush1.bf16.msra.mxu0 %v1465
        %1488 = vmatprep.subr.bf16.mxu0 0
        %1489 = vmatpush2.bf16.msra.mxu0 0
        %1490 = vmatprep.subr.bf16.mxu0 0
        %1491 = vmatpush2.bf16.msra.mxu0 0
        %1492 = vmatprep.subr.bf16.mxu0 0
        %1493 = vmatpush2.bf16.msra.mxu0 0
        %1494 = vmatprep.subr.bf16.mxu0 0
        %1495 = vmatpush2.bf16.msra.mxu0 0
        %1496 = vmatprep.subr.bf16.mxu0 0
        %1497 = vmatpush2.bf16.msra.mxu0 0
        %1498 = vmatprep.subr.bf16.mxu0 0
        %1499 = vmatpush2.bf16.msra.mxu0 0
        %1500 = vmatprep.subr.bf16.mxu0 0
        %1501 = vmatpush2.bf16.msra.mxu0 0
        %1502 = vmatprep.subr.bf16.mxu0 0
        %1503 = vmatpush2.bf16.msra.mxu0 0
        %1504 = vmatprep.mubr.bf16.mxu0 0
        %1505 = vmatmul.mubr.bf16.gmra.mxu0 %v1470
        %v1506 = vpop.f32.mrf.mxu0
        %v1507 = vadd.f32 %v1455, %v1506
        %v1508 = vpop.f32.mrf.mxu0
        %v1509 = vpop.f32.mrf.mxu0
        %v1510 = vpop.f32.mrf.mxu0
        %1511 = vdwg.mxu0
        %v1512 = vadd.f32 %v851, %v1507
        %v1513 = vld [vmem:[%s775] sm:$0x1]
        %v1514 = vld [vmem:[%s778] sm:$0x1]
        %v1515 = vsel %vm854, %v1512, 0.0
        %1516 = vadd.xlane.f32.xlu0 %v1515
        %v1517 = vpop.xlane.xlu0 %1516
        %v1518 = vmul.f32 %v1517, %v858
        %v1519 = vsub.f32 %v1512, %v1518
        %v1520 = vmul.f32 %v1519, %v1519
        %v1521 = vsel %vm854, %v1520, 0.0
        %1522 = vadd.xlane.f32.xlu0 %v1521
        %v1523 = vpop.xlane.xlu0 %1522
        %v1524 = vmul.f32 %v1523, 0.032258064
        %v1525 = vrsqrt.pop %v1524
        %v1526 = vmul.f32 %v1524, %v1525
        %vm1527 = vcmp.eq.f32.partialorder %v1524, inf
        %v1528 = vsel %vm1527, %v1524, %v1526
        %vm1529 = vcmp.eq.f32.partialorder %v1524, 0.0
        %v1530 = vand.u32 %v1524, 2147483648
        %v1531 = vsel %vm1529, %v1530, %v1528
        %v1532 = vadd.f32 %v1531, 1e-06
        %v1533 = vrcp.pop %v1532
        %v1534 = vmul.f32 1.0, %v1533
        %v1535 = vmul.f32 %v1519, %v1534
        %v1537 = vlaneseq
        %v1538 = vshrl.u32 %v1537, 7
        %v1539 = vsub.s32 0, %v1538
        %v1540 = vrot.slane %v1513, %v1539
        %v1542 = vmul.f32 %v1540, %v1535
        %v1544 = vlaneseq
        %v1545 = vshrl.u32 %v1544, 7
        %v1546 = vsub.s32 0, %v1545
        %v1547 = vrot.slane %v1514, %v1546
        %v1549 = vadd.f32 %v1542, %v1547
        %v1550 = vpack.c.bf16 %v1549, %v1549
        %v1551 = vld [vmem:[%s761] sm:$0xf]
        %v1552 = vld [vmem:[%s761 + $0x4] sm:$0xf]
        %v1553 = vld [vmem:[%s761 + $0x8] sm:$0xf]
        %v1554 = vld [vmem:[%s761 + $0xc] sm:$0xf]
        %v1555 = vld [vmem:[%s764] sm:$0x1]
        %v1557 = vlaneseq
        %v1558 = vshrl.u32 %v1557, 7
        %v1559 = vsub.s32 0, %v1558
        %v1560 = vrot.slane %v1555, %v1559
        %v1566 = vunpack.c.l.b16 %v1551
        %v1567 = vunpack.c.l.b16 %v1552
        %v1568 = vunpack.c.l.b16 %v1553
        %v1569 = vunpack.c.l.b16 %v1554
        %v1570 = vpack.c.b16 %v1567, %v1566
        %v1571 = vpack.c.b16 %v1569, %v1568
        %v1575 = vsel %vm854, %v1550, 0
        %1577 = vmatprep.subr.bf16.mxu0 0
        %1578 = vmatpush1.bf16.msra.mxu0 0
        %1579 = vmatprep.subr.bf16.mxu0 0
        %1580 = vmatpush1.bf16.msra.mxu0 0
        %1581 = vmatprep.subr.bf16.mxu0 0
        %1582 = vmatpush1.bf16.msra.mxu0 0
        %1583 = vmatprep.subr.bf16.mxu0 0
        %1584 = vmatpush1.bf16.msra.mxu0 0
        %1585 = vmatprep.subr.bf16.mxu0 0
        %1586 = vmatpush1.bf16.msra.mxu0 0
        %1587 = vmatprep.subr.bf16.mxu0 0
        %1588 = vmatpush1.bf16.msra.mxu0 0
        %1589 = vmatprep.subr.bf16.mxu0 0
        %1590 = vmatpush1.bf16.msra.mxu0 %v1571
        %1591 = vmatprep.subr.bf16.mxu0 0
        %1592 = vmatpush1.bf16.msra.mxu0 %v1570
        %1593 = vmatprep.subr.bf16.mxu0 0
        %1594 = vmatpush2.bf16.msra.mxu0 0
        %1595 = vmatprep.subr.bf16.mxu0 0
        %1596 = vmatpush2.bf16.msra.mxu0 0
        %1597 = vmatprep.subr.bf16.mxu0 0
        %1598 = vmatpush2.bf16.msra.mxu0 0
        %1599 = vmatprep.subr.bf16.mxu0 0
        %1600 = vmatpush2.bf16.msra.mxu0 0
        %1601 = vmatprep.subr.bf16.mxu0 0
        %1602 = vmatpush2.bf16.msra.mxu0 0
        %1603 = vmatprep.subr.bf16.mxu0 0
        %1604 = vmatpush2.bf16.msra.mxu0 0
        %1605 = vmatprep.subr.bf16.mxu0 0
        %1606 = vmatpush2.bf16.msra.mxu0 0
        %1607 = vmatprep.subr.bf16.mxu0 0
        %1608 = vmatpush2.bf16.msra.mxu0 0
        %1609 = vmatprep.mubr.bf16.mxu0 0
        %1610 = vmatmul.mubr.bf16.gmra.mxu0 %v1575
        %v1611 = vpop.f32.mrf.mxu0
        %v1612 = vadd.f32 %v1560, %v1611
        %v1613 = vpop.f32.mrf.mxu0
        %v1614 = vpop.f32.mrf.mxu0
        %v1615 = vpop.f32.mrf.mxu0
        %1616 = vdwg.mxu0
        %v1617 = vmul.f32 %v1612, 0.5
        %v1618 = vmul.f32 %v1612, 0.044715
        %v1619 = vmul.f32 %v1618, %v1612
        %v1620 = vmul.f32 %v1619, %v1612
        %v1621 = vadd.f32 %v1612, %v1620
        %v1622 = vmul.f32 %v1621, 0.7978846
        %v1623 = vtanh.pop %v1622
        %v1624 = vadd.f32 %v1623, 1.0
        %v1625 = vmul.f32 %v1617, %v1624
        %v1626 = vpack.c.bf16 %v1625, %v1625
        %v1627 = vld [vmem:[%s769] sm:$0xf]
        %v1628 = vld [vmem:[%s769 + $0x4] sm:$0xf]
        %v1629 = vld [vmem:[%s769 + $0x8] sm:$0xf]
        %v1630 = vld [vmem:[%s769 + $0xc] sm:$0xf]
        %v1631 = vld [vmem:[%s769 + $0x10] sm:$0xf]
        %v1632 = vld [vmem:[%s769 + $0x14] sm:$0xf]
        %v1633 = vld [vmem:[%s769 + $0x18] sm:$0xf]
        %v1634 = vld [vmem:[%s769 + $0x1c] sm:$0xf]
        %v1635 = vld [vmem:[%s769 + $0x20] sm:$0xf]
        %v1636 = vld [vmem:[%s769 + $0x24] sm:$0xf]
        %v1637 = vld [vmem:[%s769 + $0x28] sm:$0xf]
        %v1638 = vld [vmem:[%s769 + $0x2c] sm:$0xf]
        %v1639 = vld [vmem:[%s769 + $0x30] sm:$0xf]
        %v1640 = vld [vmem:[%s769 + $0x34] sm:$0xf]
        %v1641 = vld [vmem:[%s769 + $0x38] sm:$0xf]
        %v1642 = vld [vmem:[%s769 + $0x3c] sm:$0xf]
        %v1643 = vld [vmem:[%s772] sm:$0x1]
        %v1645 = vlaneseq
        %v1646 = vshrl.u32 %v1645, 7
        %v1647 = vsub.s32 0, %v1646
        %v1648 = vrot.slane %v1643, %v1647
        %v1666 = vunpack.c.l.b16 %v1627
        %v1667 = vunpack.c.l.b16 %v1628
        %v1668 = vunpack.c.l.b16 %v1629
        %v1669 = vunpack.c.l.b16 %v1630
        %v1670 = vunpack.c.l.b16 %v1631
        %v1671 = vunpack.c.l.b16 %v1632
        %v1672 = vunpack.c.l.b16 %v1633
        %v1673 = vunpack.c.l.b16 %v1634
        %v1674 = vunpack.c.l.b16 %v1635
        %v1675 = vunpack.c.l.b16 %v1636
        %v1676 = vunpack.c.l.b16 %v1637
        %v1677 = vunpack.c.l.b16 %v1638
        %v1678 = vunpack.c.l.b16 %v1639
        %v1679 = vunpack.c.l.b16 %v1640
        %v1680 = vunpack.c.l.b16 %v1641
        %v1681 = vunpack.c.l.b16 %v1642
        %v1682 = vpack.c.b16 %v1667, %v1666
        %v1683 = vpack.c.b16 %v1669, %v1668
        %v1684 = vpack.c.b16 %v1671, %v1670
        %v1685 = vpack.c.b16 %v1673, %v1672
        %v1686 = vpack.c.b16 %v1675, %v1674
        %v1687 = vpack.c.b16 %v1677, %v1676
        %v1688 = vpack.c.b16 %v1679, %v1678
        %v1689 = vpack.c.b16 %v1681, %v1680
        %1698 = vmatprep.subr.bf16.mxu0 0
        %1699 = vmatpush1.bf16.msra.mxu0 %v1689
        %1700 = vmatprep.subr.bf16.mxu0 0
        %1701 = vmatpush1.bf16.msra.mxu0 %v1688
        %1702 = vmatprep.subr.bf16.mxu0 0
        %1703 = vmatpush1.bf16.msra.mxu0 %v1687
        %1704 = vmatprep.subr.bf16.mxu0 0
        %1705 = vmatpush1.bf16.msra.mxu0 %v1686
        %1706 = vmatprep.subr.bf16.mxu0 0
        %1707 = vmatpush1.bf16.msra.mxu0 %v1685
        %1708 = vmatprep.subr.bf16.mxu0 0
        %1709 = vmatpush1.bf16.msra.mxu0 %v1684
        %1710 = vmatprep.subr.bf16.mxu0 0
        %1711 = vmatpush1.bf16.msra.mxu0 %v1683
        %1712 = vmatprep.subr.bf16.mxu0 0
        %1713 = vmatpush1.bf16.msra.mxu0 %v1682
        %1714 = vmatprep.subr.bf16.mxu0 0
        %1715 = vmatpush2.bf16.msra.mxu0 0
        %1716 = vmatprep.subr.bf16.mxu0 0
        %1717 = vmatpush2.bf16.msra.mxu0 0
        %1718 = vmatprep.subr.bf16.mxu0 0
        %1719 = vmatpush2.bf16.msra.mxu0 0
        %1720 = vmatprep.subr.bf16.mxu0 0
        %1721 = vmatpush2.bf16.msra.mxu0 0
        %1722 = vmatprep.subr.bf16.mxu0 0
        %1723 = vmatpush2.bf16.msra.mxu0 0
        %1724 = vmatprep.subr.bf16.mxu0 0
        %1725 = vmatpush2.bf16.msra.mxu0 0
        %1726 = vmatprep.subr.bf16.mxu0 0
        %1727 = vmatpush2.bf16.msra.mxu0 0
        %1728 = vmatprep.subr.bf16.mxu0 0
        %1729 = vmatpush2.bf16.msra.mxu0 0
        %1730 = vmatprep.mubr.bf16.mxu0 0
        %1731 = vmatmul.mubr.bf16.gmra.mxu0 %v1626
        %v1732 = vpop.f32.mrf.mxu0
        %v1733 = vadd.f32 %v1648, %v1732
        %v1734 = vpop.f32.mrf.mxu0
        %v1735 = vpop.f32.mrf.mxu0
        %v1736 = vpop.f32.mrf.mxu0
        %1737 = vdwg.mxu0
        %v1738 = vadd.f32 %v1512, %v1733
        %1739 = vst.msk [vmem:[%s723] sm:$0xff] %vm854, %v1738
        %s1740 = sand.u32 %s483, 1
        %s1741 = scalar_lea.sflag [#allocation4], %s1740
        %s1742 = sand.u32 %s483, 1
        %s1743 = smul.addr %s1742, 8
        %s1744 = scalar_lea.vmem [#allocation3], %s1743
        // Predicated region
        $region93: #{tpu_custom_call.1} parent=87 // pred_check
          %p1745 = pneg %p493
        $region94: #{tpu_custom_call.1} parent=87 // pred_check_branch
          %1747 = sbr.rel (%p1745) target = $region96
        $region95: #{tpu_custom_call.1} parent=87 // pred_region
          %s1749 = ssub.s32 128, 128
          %1750 = vsyncadd %s1741, %s1749
          %s1751 = smul.addr %s35, 128
          %s1752 = scalar_lea.hbm %s17, %s1751
          %s1754 = sshll.u32 %s1744, 4
          %s1755 = int_to_ptr.vmem [resolvable:$true] %s1754
          %1757 = dma.vmem_to_hbm [thread:$0]  %s1755, 128, %s1752, %s1741
        $region96: #{tpu_custom_call.1} parent=87 // pred_fallthru
          _
      $region88: #{tpu_custom_call.1} parent=5 // pred_fallthru
        _
      %p1758 = scmp.le.s32.totalorder 2, %s26
      // Predicated region
      $region97: #{tpu_custom_call.1} parent=5 // pred_check
        %p1759 = pneg %p1758
      $region98: #{tpu_custom_call.1} parent=5 // pred_check_branch
        %1761 = sbr.rel (%p1759) target = $region100
      $region99: #{tpu_custom_call.1} parent=5 // pred_region
        %s1762 = ssub.s32 %s26, 2
        // Predicated region
        $region101: #{tpu_custom_call.1} parent=99 // pred_check
          %p1763 = pneg %p499
        $region102: #{tpu_custom_call.1} parent=99 // pred_check_branch
          %1765 = sbr.rel (%p1763) target = $region104
        $region103: #{tpu_custom_call.1} parent=99 // pred_region
          %s1766 = sand.u32 %s484, 1
          %s1767 = scalar_lea.sflag [#allocation4], %s1766
          %s1768 = sand.u32 %s484, 1
          %s1769 = smul.addr %s1768, 8
          %s1770 = scalar_lea.vmem [#allocation3], %s1769
          %1771 = dma.done %s1767, 128
        $region104: #{tpu_custom_call.1} parent=99 // pred_fallthru
          _
      $region100: #{tpu_custom_call.1} parent=5 // pred_fallthru
        _
    $region6: #{tpu_custom_call.1} parent=1 // loop_footer
      %s30 = sadd.s32 1, %s26
    $region7: #{tpu_custom_call.1} parent=1 // loop_footer_branch
      %25 = sbr.rel target = $region3
    $region8: #{tpu_custom_call.1} parent=1 // loop_exit
      _
    %1772 = vsyncpa [#allocation4], 1
    %s1773 = scalar_lea.sflag [#allocation4], 1
    %1774 = vsyncpa %s1773, 1

</llo_original>
